<compile_context>
chip_gen: v5e
topology: v5e:2x2
jax: 0.10.0
libtpu: 0.0.40
codegen_flags: <defaults>
</compile_context>

<pallas_src>
import jax
import jax.numpy as jnp
from jax.experimental import pallas as pl
from jax.experimental.pallas import tpu as pltpu

H1_PAD = 512   # 500 -> 512 (lane aligned)
H2_PAD = 128   # 100 -> 128 (lane aligned)
LANE = 128


def _round_up(x, m):
    return (x + m - 1) // m * m


def _choose_batch_tile(B):
    """Pick (padded batch, batch tile).

    Batch is padded to a lane multiple (>=128) so the lane-dense (1, TB) output
    block and the tail matmul are always tile-aligned. Large batches get big
    tiles (512..2048) to amortize per-step pipeline overhead, while keeping
    >=2 grid steps so v7x's 2 TensorCores both get work.
    """
    Bp = max(_round_up(B, LANE), LANE)
    if Bp <= 1024:
        TB = min(Bp, 512)
    else:
        TB = min(2048, max(512, _round_up(Bp // 4, LANE)))
    Bp = _round_up(Bp, TB)
    return Bp, TB


def _mlp_kernel(x_ref, w1_ref, b1_ref, w2_ref, b2_ref, w3_ref, b3_ref, o_ref):
    # x:  (TB, Din_p) bf16      w1: (Din_p, 512) bf16   b1: (1, 512) f32
    # w2: (512, 128) bf16       b2: (1, 128) f32
    # w3: (8, 128)  bf16 (row 0 real, rows 1..7 zero)   b3: (1, 1) f32
    # o:  (1, TB) f32  (lane-dense output row)
    x = x_ref[...]
    h1 = jnp.dot(x, w1_ref[...], preferred_element_type=jnp.float32) + b1_ref[...]
    h1 = jnp.maximum(h1, 0.0)
    h2 = jnp.dot(h1.astype(jnp.bfloat16), w2_ref[...],
                 preferred_element_type=jnp.float32) + b2_ref[...]
    h2 = jnp.maximum(h2, 0.0)
    # Final (128 -> 1) layer as A @ B.T so the result is already a lane-dense
    # (·, TB) row (same contraction pattern as attention scores). w3 is padded
    # to 8 rows so the lhs is sublane-aligned; take row 0 of the (8, TB) result.
    h3 = jnp.einsum('oh,bh->ob', w3_ref[...], h2.astype(jnp.bfloat16),
                    preferred_element_type=jnp.float32)          # (8, TB)
    o_ref[...] = jax.nn.sigmoid(h3[0:1, :] + b3_ref[...])


def prepare_params(params, seq_len):
    """One-time zero-padding to lane-aligned shapes + bf16 cast of MXU operands."""
    e = params["emb"].shape[1]
    d_in = seq_len * e
    d_in_p = _round_up(d_in, LANE)

    w1 = jnp.zeros((d_in_p, H1_PAD), jnp.float32).at[:d_in, :500].set(params["w1"])
    b1 = jnp.zeros((1, H1_PAD), jnp.float32).at[0, :500].set(params["b1"])
    w2 = jnp.zeros((H1_PAD, H2_PAD), jnp.float32).at[:500, :100].set(params["w2"])
    b2 = jnp.zeros((1, H2_PAD), jnp.float32).at[0, :100].set(params["b2"])
    w3 = jnp.zeros((8, H2_PAD), jnp.float32).at[0, :100].set(params["w3"][:, 0])
    b3 = params["b3"].reshape(1, 1).astype(jnp.float32)

    return {
        "emb": params["emb"].astype(jnp.bfloat16),   # gather in bf16 (half traffic)
        "w1": w1.astype(jnp.bfloat16),
        "b1": b1,
        "w2": w2.astype(jnp.bfloat16),
        "b2": b2,
        "w3": w3.astype(jnp.bfloat16),
        "b3": b3,
    }


def simple_nn_forward(tokens, prep):
    """tokens: (B, T) int32 in [0, token_size). Returns (B, 1) f32."""
    emb = prep["emb"]
    B, T = tokens.shape
    E = emb.shape[1]
    d_in = T * E
    d_in_p = prep["w1"].shape[0]

    Bp, TB = _choose_batch_tile(B)

    # Embedding gather directly in bf16 + a single zero pad (zero feature pads
    # are exact no-ops through the zero-padded weight columns; padded batch
    # rows are garbage and are dropped by the final slice -- keep that slice).
    # allow_input_fusion on this operand lets XLA fuse the gather/pad chain
    # into the pallas_call operand when it can.
    # TODO(synk): for very large vocab/batch, move the gather fully in-kernel
    # (scalar-prefetched token ids + VMEM/HBM-resident emb table) so the kernel
    # input shrinks to 4 B/token.
    emb_flat = jnp.take(emb, tokens, axis=0).reshape(B, d_in)
    x = jnp.pad(emb_flat, ((0, Bp - B), (0, d_in_p - d_in)))

    w1, b1, w2, b2, w3, b3 = (prep[k] for k in ("w1", "b1", "w2", "b2", "w3", "b3"))
    grid = (Bp // TB,)

    def const(a):  # weight/bias blocks: constant index -> VMEM-resident across grid
        return pl.BlockSpec(a.shape, lambda i: (0, 0))

    flops = 2 * Bp * (d_in_p * H1_PAD + H1_PAD * H2_PAD + 8 * H2_PAD)
    bytes_accessed = (x.size * 2 + (w1.size + w2.size + w3.size) * 2
                      + (b1.size + b2.size + b3.size) * 4 + Bp * 4)

    out = pl.pallas_call(
        _mlp_kernel,
        out_shape=jax.ShapeDtypeStruct((1, Bp), jnp.float32),
        grid=grid,
        in_specs=[pl.BlockSpec((TB, d_in_p), lambda i: (i, 0)),
                  const(w1), const(b1), const(w2), const(b2), const(w3), const(b3)],
        out_specs=pl.BlockSpec((1, TB), lambda i: (0, i)),
        compiler_params=pltpu.CompilerParams(
            dimension_semantics=("parallel",),
            allow_input_fusion=[True, False, False, False, False, False, False],
        ),
        cost_estimate=pl.CostEstimate(flops=flops, transcendentals=Bp,
                                      bytes_accessed=bytes_accessed),
    )(x, w1, b1, w2, b2, w3, b3)

    return out[0, :B].reshape(B, 1)


def init_params(key, token_size, emb_size, seq_len):
    ks = jax.random.split(key, 7)
    d_in = seq_len * emb_size
    scale = lambda fan_in: 1.0 / jnp.sqrt(jnp.float32(fan_in))
    return {
        "emb": jax.random.normal(ks[0], (token_size, emb_size), jnp.float32),
        # weights stored (in, out), i.e. already transposed vs torch's (out, in)
        "w1": jax.random.normal(ks[1], (d_in, 500), jnp.float32) * scale(d_in),
        "b1": jax.random.normal(ks[2], (500,), jnp.float32) * scale(d_in),
        "w2": jax.random.normal(ks[3], (500, 100), jnp.float32) * scale(500),
        "b2": jax.random.normal(ks[4], (100,), jnp.float32) * scale(500),
        "w3": jax.random.normal(ks[5], (100, 1), jnp.float32) * scale(100),
        "b3": jax.random.normal(ks[6], (1,), jnp.float32) * scale(100),
    }


def reference_forward(tokens, params):
    B, T = tokens.shape
    emb_flat = jnp.take(params["emb"], tokens, axis=0).reshape(B, -1)
    h1 = jnp.maximum(emb_flat @ params["w1"] + params["b1"], 0.0)
    h2 = jnp.maximum(h1 @ params["w2"] + params["b2"], 0.0)
    return jax.nn.sigmoid(h2 @ params["w3"] + params["b3"])


if __name__ == "__main__":
    token_size, emb_size, seq_len, batch = 64, 32, 8, 2

    key = jax.random.PRNGKey(0)
    k_param, k_tok = jax.random.split(key)
    params = init_params(k_param, token_size, emb_size, seq_len)
    prep = prepare_params(params, seq_len)
    tokens = jax.random.randint(k_tok, (batch, seq_len), 0, token_size, jnp.int32)

    fwd = jax.jit(simple_nn_forward)
    out = fwd(tokens, prep)
    out = jax.block_until_ready(out)

    ref = reference_forward(tokens, params)
    assert out.shape == (batch, 1), out.shape
    # bf16 MXU operands / bf16 embedding table vs the pure-f32 reference.
    assert jnp.allclose(out, ref, atol=2e-2, rtol=2e-2), (out, ref)

    print("KERNEL_OK")
</pallas_src>

<mosaic_0001>
module attributes {stable_mosaic.version = 11 : i64} {
  func.func @_mlp_kernel(%arg0: i32, %arg1: memref<128x256xbf16, #tpu.memory_space<vmem>>, %arg2: memref<256x512xbf16, #tpu.memory_space<vmem>>, %arg3: memref<1x512xf32, #tpu.memory_space<vmem>>, %arg4: memref<512x128xbf16, #tpu.memory_space<vmem>>, %arg5: memref<1x128xf32, #tpu.memory_space<vmem>>, %arg6: memref<8x128xbf16, #tpu.memory_space<vmem>>, %arg7: memref<1x1xf32, #tpu.memory_space<vmem>>, %arg8: memref<1x128xf32, #tpu.memory_space<vmem>>) attributes {dimension_semantics = [#tpu.dimension_semantics<parallel>], iteration_bounds = array<i64: 1>, scalar_prefetch = 0 : i64, scratch_operands = 0 : i64, tpu.core_type = #tpu.core_type<tc>, window_params = [{transform_indices = @transform_0, window_bounds = array<i64: 128, 256>}, {pipeline_mode = #tpu.pipeline_mode<synchronous>, transform_indices = @transform_1, window_bounds = array<i64: 256, 512>}, {pipeline_mode = #tpu.pipeline_mode<synchronous>, transform_indices = @transform_2, window_bounds = array<i64: 1, 512>}, {pipeline_mode = #tpu.pipeline_mode<synchronous>, transform_indices = @transform_3, window_bounds = array<i64: 512, 128>}, {pipeline_mode = #tpu.pipeline_mode<synchronous>, transform_indices = @transform_4, window_bounds = array<i64: 1, 128>}, {pipeline_mode = #tpu.pipeline_mode<synchronous>, transform_indices = @transform_5, window_bounds = array<i64: 8, 128>}, {pipeline_mode = #tpu.pipeline_mode<synchronous>, transform_indices = @transform_6, window_bounds = array<i64: 1, 1>}, {transform_indices = @transform_7, window_bounds = array<i64: 1, 128>}]} {
    %c0 = arith.constant 0 : index
    %c0_0 = arith.constant 0 : index
    %0 = vector.load %arg1[%c0, %c0_0] : memref<128x256xbf16, #tpu.memory_space<vmem>>, vector<128x256xbf16>
    %c0_1 = arith.constant 0 : index
    %c0_2 = arith.constant 0 : index
    %1 = vector.load %arg2[%c0_1, %c0_2] : memref<256x512xbf16, #tpu.memory_space<vmem>>, vector<256x512xbf16>
    %cst = arith.constant dense<0.000000e+00> : vector<128x512xf32>
    %2 = tpu.matmul %0, %1, %cst {dimension_numbers = #tpu.dot_dimension_numbers<[1], [0], [0], [1], [0, 0, 1, 1], [], []>} : vector<128x256xbf16>, vector<256x512xbf16>, vector<128x512xf32> -> vector<128x512xf32>
    %c0_3 = arith.constant 0 : index
    %c0_4 = arith.constant 0 : index
    %3 = vector.load %arg3[%c0_3, %c0_4] : memref<1x512xf32, #tpu.memory_space<vmem>>, vector<1x512xf32>
    %4 = vector.broadcast %3 : vector<1x512xf32> to vector<128x512xf32>
    %5 = arith.addf %2, %4 : vector<128x512xf32>
    %cst_5 = arith.constant 0.000000e+00 : f32
    %6 = vector.broadcast %cst_5 : f32 to vector<128x512xf32>
    %7 = arith.maximumf %5, %6 : vector<128x512xf32>
    %8 = arith.truncf %7 : vector<128x512xf32> to vector<128x512xbf16>
    %c0_6 = arith.constant 0 : index
    %c0_7 = arith.constant 0 : index
    %9 = vector.load %arg4[%c0_6, %c0_7] : memref<512x128xbf16, #tpu.memory_space<vmem>>, vector<512x128xbf16>
    %cst_8 = arith.constant dense<0.000000e+00> : vector<128x128xf32>
    %10 = tpu.matmul %8, %9, %cst_8 {dimension_numbers = #tpu.dot_dimension_numbers<[1], [0], [0], [1], [0, 0, 1, 1], [], []>} : vector<128x512xbf16>, vector<512x128xbf16>, vector<128x128xf32> -> vector<128x128xf32>
    %c0_9 = arith.constant 0 : index
    %c0_10 = arith.constant 0 : index
    %11 = vector.load %arg5[%c0_9, %c0_10] : memref<1x128xf32, #tpu.memory_space<vmem>>, vector<1x128xf32>
    %12 = vector.broadcast %11 : vector<1x128xf32> to vector<128x128xf32>
    %13 = arith.addf %10, %12 : vector<128x128xf32>
    %cst_11 = arith.constant 0.000000e+00 : f32
    %14 = vector.broadcast %cst_11 : f32 to vector<128x128xf32>
    %15 = arith.maximumf %13, %14 : vector<128x128xf32>
    %c0_12 = arith.constant 0 : index
    %c0_13 = arith.constant 0 : index
    %16 = vector.load %arg6[%c0_12, %c0_13] : memref<8x128xbf16, #tpu.memory_space<vmem>>, vector<8x128xbf16>
    %17 = arith.truncf %15 : vector<128x128xf32> to vector<128x128xbf16>
    "tpu.trace_start"() <{level = 10 : i32, message = "oh,bh->ob"}> : () -> ()
    %cst_14 = arith.constant dense<0.000000e+00> : vector<8x128xf32>
    %18 = tpu.matmul %16, %17, %cst_14 {dimension_numbers = #tpu.dot_dimension_numbers<[1], [1], [0], [0], [0, 0, 1, 0], [], []>} : vector<8x128xbf16>, vector<128x128xbf16>, vector<8x128xf32> -> vector<8x128xf32>
    "tpu.trace_stop"() : () -> ()
    %19 = vector.extract_strided_slice %18 {offsets = [0, 0], sizes = [1, 128], strides = [1, 1]} : vector<8x128xf32> to vector<1x128xf32>
    %c0_15 = arith.constant 0 : index
    %c0_16 = arith.constant 0 : index
    %20 = vector.load %arg7[%c0_15, %c0_16] : memref<1x1xf32, #tpu.memory_space<vmem>>, vector<1x1xf32>
    %21 = vector.broadcast %20 : vector<1x1xf32> to vector<1x128xf32>
    %22 = arith.addf %19, %21 : vector<1x128xf32>
    %23 = arith.negf %22 : vector<1x128xf32>
    %24 = math.exp %23 : vector<1x128xf32>
    %cst_17 = arith.constant 1.000000e+00 : f32
    %25 = vector.broadcast %cst_17 : f32 to vector<1x128xf32>
    %26 = arith.addf %25, %24 : vector<1x128xf32>
    %27 = arith.divf %25, %26 : vector<1x128xf32>
    %c0_18 = arith.constant 0 : index
    %c0_19 = arith.constant 0 : index
    %28 = vector.load %arg8[%c0_18, %c0_19] : memref<1x128xf32, #tpu.memory_space<vmem>>, vector<1x128xf32>
    tpu.vector_store %arg8[%c0_18, %c0_19], %27 {strides = array<i32>} : memref<1x128xf32, #tpu.memory_space<vmem>>, vector<1x128xf32>,
    return
  }
  func.func @transform_0(%arg0: i32) -> (i32, i32) {
    %c0_i32 = arith.constant 0 : i32
    %c0_i32_0 = arith.constant 0 : i32
    return %arg0, %c0_i32 : i32, i32
  }
  func.func @transform_1(%arg0: i32) -> (i32, i32) {
    %c0_i32 = arith.constant 0 : i32
    %c0_i32_0 = arith.constant 0 : i32
    %c0_i32_1 = arith.constant 0 : i32
    return %c0_i32, %c0_i32_0 : i32, i32
  }
  func.func @transform_2(%arg0: i32) -> (i32, i32) {
    %c0_i32 = arith.constant 0 : i32
    %c0_i32_0 = arith.constant 0 : i32
    %c0_i32_1 = arith.constant 0 : i32
    return %c0_i32, %c0_i32_0 : i32, i32
  }
  func.func @transform_3(%arg0: i32) -> (i32, i32) {
    %c0_i32 = arith.constant 0 : i32
    %c0_i32_0 = arith.constant 0 : i32
    %c0_i32_1 = arith.constant 0 : i32
    return %c0_i32, %c0_i32_0 : i32, i32
  }
  func.func @transform_4(%arg0: i32) -> (i32, i32) {
    %c0_i32 = arith.constant 0 : i32
    %c0_i32_0 = arith.constant 0 : i32
    %c0_i32_1 = arith.constant 0 : i32
    return %c0_i32, %c0_i32_0 : i32, i32
  }
  func.func @transform_5(%arg0: i32) -> (i32, i32) {
    %c0_i32 = arith.constant 0 : i32
    %c0_i32_0 = arith.constant 0 : i32
    %c0_i32_1 = arith.constant 0 : i32
    return %c0_i32, %c0_i32_0 : i32, i32
  }
  func.func @transform_6(%arg0: i32) -> (i32, i32) {
    %c0_i32 = arith.constant 0 : i32
    %c0_i32_0 = arith.constant 0 : i32
    %c0_i32_1 = arith.constant 0 : i32
    return %c0_i32, %c0_i32_0 : i32, i32
  }
  func.func @transform_7(%arg0: i32) -> (i32, i32) {
    %c0_i32 = arith.constant 0 : i32
    %c0_i32_0 = arith.constant 0 : i32
    return %c0_i32, %arg0 : i32, i32
  }
}

</mosaic_0001>

<llo_original>
// kernel: simple_nn_forward.2
$region0: #{simple_nn_forward.2}
  #allocation0 [shape = 'u32[]', space=smem, size = 0x4, offset = 0x4, fixed_abs, tag = 'smem constant byte address 0x4 - core index']
  #allocation1 [shape = 'u32[72,128]{1,0:T(1,128)}', space=vmem, size = 0x9000, scoped, tag = 'internal scratch']
  #allocation2 [shape = 'u32[2048]{0}', space=vmem, size = 0x2000, scoped, tag = 'scoped memory for simple_nn_forward.2']
  #allocation3 [shape = 'u32[2048]{0}', space=vmem, size = 0x2000, scoped, tag = 'scoped memory for simple_nn_forward.2']
  #allocation4 [shape = 'u32[2048]{0}', space=vmem, size = 0x2000, scoped, tag = 'scoped memory for simple_nn_forward.2']
  #allocation5 [shape = 'u32[2048]{0}', space=vmem, size = 0x2000, scoped, tag = 'scoped memory for simple_nn_forward.2']
  #allocation6 [shape = 'u32[2048]{0}', space=vmem, size = 0x2000, scoped, tag = 'scoped memory for simple_nn_forward.2']
  #allocation7 [shape = 'f32[1,1]{1,0:T(1,128)S(1)}', space=vmem, size = 0x200, scoped, tag = 'scoped memory for simple_nn_forward.2']
  %s0 = inlined_call_operand.hbm [shape: bf16[256,512], index: 0, kind: input, shape index: {}]
  %s1 = inlined_call_operand.vmem [shape: f32[1,512], index: 1, kind: input, shape index: {}]
  %s2 = inlined_call_operand.hbm [shape: bf16[512,128], index: 2, kind: input, shape index: {}]
  %s3 = inlined_call_operand.vmem [shape: f32[1,128], index: 3, kind: input, shape index: {}]
  %s4 = inlined_call_operand.vmem [shape: bf16[8,128], index: 4, kind: input, shape index: {}]
  %s5 = inlined_call_operand.<no memory space> [shape: f32[1,1], index: 5, kind: input, shape index: {}]
  %s6 = inlined_call_operand.vmem [shape: bf16[2,256], index: 6, kind: input, shape index: {}]
  %s7 = inlined_call_operand.<no memory space> [shape: bf16[], index: 7, kind: input, shape index: {}]
  %s8 = inlined_call_operand.vmem [shape: f32[1,128], index: 8, kind: output, shape index: {}]
  %s9 = sld [smem:[#allocation0]]
  $region46: #{simple_nn_forward.2} parent=0
    _
  %s11 = ssub.s32 1, %s9
  %s12 = scalar_select 0, %s11, %s9
  %v13 = vstv %s7
  %v14 = vunpack.i.l.bf16 %v13
  %v16 = vunpack.i.h.bf16 %v13
  %v18 = vstv %s5
  %19 = vst [vmem:[#allocation7] sm:$0x1] %v18
  $region1: #{simple_nn_forward.2} parent=0
    #allocation8 [shape = 'u8[262144]{0}', space=vmem, size = 0x40000, scoped, tag = 'input window, operand 1, single buffered']
    #allocation9 [shape = 's32[1]{0}', space=sflag, size = 0x4, scoped, tag = 'scoped memory for simple_nn_forward.2']
    #allocation10 [shape = 'u8[131072]{0}', space=vmem, size = 0x20000, scoped, tag = 'input window, operand 3, single buffered']
    #allocation11 [shape = 's32[1]{0}', space=sflag, size = 0x4, scoped, tag = 'scoped memory for simple_nn_forward.2']
    #allocation12 [shape = 'u8[65536]{0}', space=vmem, size = 0x10000, dematerialized = true, scoped, tag = 'FusionAdapter Buffer %fusion.1 = bf16[128,256]{1,0:T(8,128)(2,1)} fusion(%param_6.1, %param_7), kind=kLoop, calls=%fused_computation.2.clone, metadata={op_name="jit(simple_nn_forward)/jit(_pad)/pad" stack_frame_id=9}']
    %20 = vsyncpa [#allocation9], 0
    %21 = vsyncpa [#allocation11], 0
    // Predicated region
    $region2: #{simple_nn_forward.2} parent=1 // pred_check
      _
    $region3: #{simple_nn_forward.2} parent=1 // pred_check_branch
      %23 = sbr.rel (0) target = $region5
    $region4: #{simple_nn_forward.2} parent=1 // pred_region
      _
    $region5: #{simple_nn_forward.2} parent=1 // pred_fallthru
      _
    // Predicated region
    $region6: #{simple_nn_forward.2} parent=1 // pred_check
      _
    $region7: #{simple_nn_forward.2} parent=1 // pred_check_branch
      %25 = sbr.rel (0) target = $region9
    $region8: #{simple_nn_forward.2} parent=1 // pred_region
      %27 = vsyncadd [#allocation9], 0
      %s28 = sshll.u32 %s0, 4
      %s29 = int_to_ptr.hbm [resolvable:$true] %s28
      %s30 = sshll.u32 [#allocation8], 4
      %s31 = int_to_ptr.vmem [resolvable:$true] %s30
      %36 = dma.hbm_to_vmem [thread:$0]  %s29, 8192, %s31, [#allocation9], 256, 256, 16
    $region9: #{simple_nn_forward.2} parent=1 // pred_fallthru
      _
    // Predicated region
    $region10: #{simple_nn_forward.2} parent=1 // pred_check
      _
    $region11: #{simple_nn_forward.2} parent=1 // pred_check_branch
      %38 = sbr.rel (0) target = $region13
    $region12: #{simple_nn_forward.2} parent=1 // pred_region
      _
    $region13: #{simple_nn_forward.2} parent=1 // pred_fallthru
      _
    // Predicated region
    $region14: #{simple_nn_forward.2} parent=1 // pred_check
      _
    $region15: #{simple_nn_forward.2} parent=1 // pred_check_branch
      %40 = sbr.rel (0) target = $region17
    $region16: #{simple_nn_forward.2} parent=1 // pred_region
      %42 = vsyncadd [#allocation11], 0
      %s43 = sshll.u32 %s2, 4
      %s44 = int_to_ptr.hbm [resolvable:$true] %s43
      %s45 = sshll.u32 [#allocation10], 4
      %s46 = int_to_ptr.vmem [resolvable:$true] %s45
      %51 = dma.hbm_to_vmem [thread:$0]  %s44, 4096, %s46, [#allocation11], 64, 64, 4
    $region17: #{simple_nn_forward.2} parent=1 // pred_fallthru
      _
    // Predicated region
    $region18: #{simple_nn_forward.2} parent=1 // pred_check
      _
    $region19: #{simple_nn_forward.2} parent=1 // pred_check_branch
      %53 = sbr.rel (0) target = $region21
    $region20: #{simple_nn_forward.2} parent=1 // pred_region
      _
    $region21: #{simple_nn_forward.2} parent=1 // pred_fallthru
      _
    // Predicated region
    $region22: #{simple_nn_forward.2} parent=1 // pred_check
      _
    $region23: #{simple_nn_forward.2} parent=1 // pred_check_branch
      %55 = sbr.rel (0) target = $region25
    $region24: #{simple_nn_forward.2} parent=1 // pred_region
      _
    $region25: #{simple_nn_forward.2} parent=1 // pred_fallthru
      _
    // Predicated region
    $region26: #{simple_nn_forward.2} parent=1 // pred_check
      _
    $region27: #{simple_nn_forward.2} parent=1 // pred_check_branch
      %57 = sbr.rel (0) target = $region29
    $region28: #{simple_nn_forward.2} parent=1 // pred_region
      _
    $region29: #{simple_nn_forward.2} parent=1 // pred_fallthru
      _
    // Predicated region
    $region30: #{simple_nn_forward.2} parent=1 // pred_check
      _
    $region31: #{simple_nn_forward.2} parent=1 // pred_check_branch
      %59 = sbr.rel (0) target = $region33
    $region32: #{simple_nn_forward.2} parent=1 // pred_region
      %61 = dma.done [#allocation9], 8192
    $region33: #{simple_nn_forward.2} parent=1 // pred_fallthru
      _
    // Predicated region
    $region34: #{simple_nn_forward.2} parent=1 // pred_check
      _
    $region35: #{simple_nn_forward.2} parent=1 // pred_check_branch
      %63 = sbr.rel (0) target = $region37
    $region36: #{simple_nn_forward.2} parent=1 // pred_region
      %65 = dma.done [#allocation11], 4096
    $region37: #{simple_nn_forward.2} parent=1 // pred_fallthru
      _
    %s67 = sor.u32 3, 1
    %s68 = sand.u32 %s67, 1
    %v69 = vld [vmem:[%s6] sm:%s68]
    %v70 = vunpack.c.l.bf16 %v69
    %v71 = vunpack.c.h.bf16 %v69
    %v72 = vlaneseq
    %v73 = vshrl.u32 %v72, 7
    %vm75 = vcmp.lt.s32.totalorder %v73, 2
    %v76 = vsel %vm75, %v70, %v14
    %v77 = vpack.c.bf16 0.0, %v76
    %s79 = ssub.s32 16, 1
    %80 = vst [vmem:[#allocation12] sm:%s79] %v77
    %s81 = scalar_lea.vmem %s6, 1
    %s83 = sor.u32 3, 1
    %s84 = sand.u32 %s83, 1
    %v85 = vld [vmem:[%s81] sm:%s84]
    %v86 = vunpack.c.l.bf16 %v85
    %v87 = vunpack.c.h.bf16 %v85
    %v88 = vlaneseq
    %v89 = vshrl.u32 %v88, 7
    %vm91 = vcmp.lt.s32.totalorder %v89, 2
    %v92 = vsel %vm91, %v86, %v14
    %s93 = scalar_lea.vmem [#allocation12], 4
    %v94 = vpack.c.bf16 0.0, %v92
    %s96 = ssub.s32 16, 1
    %97 = vst [vmem:[%s93] sm:%s96] %v94
    %s98 = scalar_lea.vmem [#allocation12], 8
    %v99 = vpack.c.bf16 0.0, %v14
    %s101 = ssub.s32 16, 1
    %102 = vst [vmem:[%s98] sm:%s101] %v99
    %s103 = scalar_lea.vmem [#allocation12], 12
    %v104 = vpack.c.bf16 0.0, %v14
    %s106 = ssub.s32 16, 1
    %107 = vst [vmem:[%s103] sm:%s106] %v104
    %s108 = scalar_lea.vmem [#allocation12], 16
    %v109 = vpack.c.bf16 0.0, %v14
    %s111 = ssub.s32 16, 1
    %112 = vst [vmem:[%s108] sm:%s111] %v109
    %s113 = scalar_lea.vmem [#allocation12], 20
    %v114 = vpack.c.bf16 0.0, %v14
    %s116 = ssub.s32 16, 1
    %117 = vst [vmem:[%s113] sm:%s116] %v114
    %s118 = scalar_lea.vmem [#allocation12], 24
    %v119 = vpack.c.bf16 0.0, %v14
    %s121 = ssub.s32 16, 1
    %122 = vst [vmem:[%s118] sm:%s121] %v119
    %s123 = scalar_lea.vmem [#allocation12], 28
    %v124 = vpack.c.bf16 0.0, %v14
    %s126 = ssub.s32 16, 1
    %127 = vst [vmem:[%s123] sm:%s126] %v124
    %s128 = scalar_lea.vmem [#allocation12], 32
    %v129 = vpack.c.bf16 0.0, %v14
    %s131 = ssub.s32 16, 1
    %132 = vst [vmem:[%s128] sm:%s131] %v129
    %s133 = scalar_lea.vmem [#allocation12], 36
    %v134 = vpack.c.bf16 0.0, %v14
    %s136 = ssub.s32 16, 1
    %137 = vst [vmem:[%s133] sm:%s136] %v134
    %s138 = scalar_lea.vmem [#allocation12], 40
    %v139 = vpack.c.bf16 0.0, %v14
    %s141 = ssub.s32 16, 1
    %142 = vst [vmem:[%s138] sm:%s141] %v139
    %s143 = scalar_lea.vmem [#allocation12], 44
    %v144 = vpack.c.bf16 0.0, %v14
    %s146 = ssub.s32 16, 1
    %147 = vst [vmem:[%s143] sm:%s146] %v144
    %s148 = scalar_lea.vmem [#allocation12], 48
    %v149 = vpack.c.bf16 0.0, %v14
    %s151 = ssub.s32 16, 1
    %152 = vst [vmem:[%s148] sm:%s151] %v149
    %s153 = scalar_lea.vmem [#allocation12], 52
    %v154 = vpack.c.bf16 0.0, %v14
    %s156 = ssub.s32 16, 1
    %157 = vst [vmem:[%s153] sm:%s156] %v154
    %s158 = scalar_lea.vmem [#allocation12], 56
    %v159 = vpack.c.bf16 0.0, %v14
    %s161 = ssub.s32 16, 1
    %162 = vst [vmem:[%s158] sm:%s161] %v159
    %s163 = scalar_lea.vmem [#allocation12], 60
    %v164 = vpack.c.bf16 0.0, %v14
    %s166 = ssub.s32 16, 1
    %167 = vst [vmem:[%s163] sm:%s166] %v164
    %s168 = scalar_lea.vmem [#allocation12], 64
    %v169 = vpack.c.bf16 0.0, %v14
    %s171 = ssub.s32 16, 1
    %172 = vst [vmem:[%s168] sm:%s171] %v169
    %s173 = scalar_lea.vmem [#allocation12], 68
    %v174 = vpack.c.bf16 0.0, %v14
    %s176 = ssub.s32 16, 1
    %177 = vst [vmem:[%s173] sm:%s176] %v174
    %s178 = scalar_lea.vmem [#allocation12], 72
    %v179 = vpack.c.bf16 0.0, %v14
    %s181 = ssub.s32 16, 1
    %182 = vst [vmem:[%s178] sm:%s181] %v179
    %s183 = scalar_lea.vmem [#allocation12], 76
    %v184 = vpack.c.bf16 0.0, %v14
    %s186 = ssub.s32 16, 1
    %187 = vst [vmem:[%s183] sm:%s186] %v184
    %s188 = scalar_lea.vmem [#allocation12], 80
    %v189 = vpack.c.bf16 0.0, %v14
    %s191 = ssub.s32 16, 1
    %192 = vst [vmem:[%s188] sm:%s191] %v189
    %s193 = scalar_lea.vmem [#allocation12], 84
    %v194 = vpack.c.bf16 0.0, %v14
    %s196 = ssub.s32 16, 1
    %197 = vst [vmem:[%s193] sm:%s196] %v194
    %s198 = scalar_lea.vmem [#allocation12], 88
    %v199 = vpack.c.bf16 0.0, %v14
    %s201 = ssub.s32 16, 1
    %202 = vst [vmem:[%s198] sm:%s201] %v199
    %s203 = scalar_lea.vmem [#allocation12], 92
    %v204 = vpack.c.bf16 0.0, %v14
    %s206 = ssub.s32 16, 1
    %207 = vst [vmem:[%s203] sm:%s206] %v204
    %s208 = scalar_lea.vmem [#allocation12], 96
    %v209 = vpack.c.bf16 0.0, %v14
    %s211 = ssub.s32 16, 1
    %212 = vst [vmem:[%s208] sm:%s211] %v209
    %s213 = scalar_lea.vmem [#allocation12], 100
    %v214 = vpack.c.bf16 0.0, %v14
    %s216 = ssub.s32 16, 1
    %217 = vst [vmem:[%s213] sm:%s216] %v214
    %s218 = scalar_lea.vmem [#allocation12], 104
    %v219 = vpack.c.bf16 0.0, %v14
    %s221 = ssub.s32 16, 1
    %222 = vst [vmem:[%s218] sm:%s221] %v219
    %s223 = scalar_lea.vmem [#allocation12], 108
    %v224 = vpack.c.bf16 0.0, %v14
    %s226 = ssub.s32 16, 1
    %227 = vst [vmem:[%s223] sm:%s226] %v224
    %s228 = scalar_lea.vmem [#allocation12], 112
    %v229 = vpack.c.bf16 0.0, %v14
    %s231 = ssub.s32 16, 1
    %232 = vst [vmem:[%s228] sm:%s231] %v229
    %s233 = scalar_lea.vmem [#allocation12], 116
    %v234 = vpack.c.bf16 0.0, %v14
    %s236 = ssub.s32 16, 1
    %237 = vst [vmem:[%s233] sm:%s236] %v234
    %s238 = scalar_lea.vmem [#allocation12], 120
    %v239 = vpack.c.bf16 0.0, %v14
    %s241 = ssub.s32 16, 1
    %242 = vst [vmem:[%s238] sm:%s241] %v239
    %s243 = scalar_lea.vmem [#allocation12], 124
    %v244 = vpack.c.bf16 0.0, %v14
    %s246 = ssub.s32 16, 1
    %247 = vst [vmem:[%s243] sm:%s246] %v244
    %v248 = vld [vmem:[#allocation12] sm:$0xff]
    %v249 = vld [vmem:[#allocation12 + $0x8] sm:$0xff]
    %v250 = vld [vmem:[#allocation12 + $0x10] sm:$0xff]
    %v251 = vld [vmem:[#allocation12 + $0x18] sm:$0xff]
    %v252 = vld [vmem:[#allocation12 + $0x20] sm:$0xff]
    %v253 = vld [vmem:[#allocation12 + $0x28] sm:$0xff]
    %v254 = vld [vmem:[#allocation12 + $0x30] sm:$0xff]
    %v255 = vld [vmem:[#allocation12 + $0x38] sm:$0xff]
    %v256 = vld [vmem:[#allocation12 + $0x40] sm:$0xff]
    %v257 = vld [vmem:[#allocation12 + $0x48] sm:$0xff]
    %v258 = vld [vmem:[#allocation12 + $0x50] sm:$0xff]
    %v259 = vld [vmem:[#allocation12 + $0x58] sm:$0xff]
    %v260 = vld [vmem:[#allocation12 + $0x60] sm:$0xff]
    %v261 = vld [vmem:[#allocation12 + $0x68] sm:$0xff]
    %v262 = vld [vmem:[#allocation12 + $0x70] sm:$0xff]
    %v263 = vld [vmem:[#allocation12 + $0x78] sm:$0xff]
    %v264 = vld [vmem:[#allocation8] sm:$0xff]
    %v265 = vld [vmem:[#allocation8 + $0x8] sm:$0xff]
    %v266 = vld [vmem:[#allocation8 + $0x10] sm:$0xff]
    %v267 = vld [vmem:[#allocation8 + $0x18] sm:$0xff]
    %v268 = vld [vmem:[#allocation8 + $0x20] sm:$0xff]
    %v269 = vld [vmem:[#allocation8 + $0x28] sm:$0xff]
    %v270 = vld [vmem:[#allocation8 + $0x30] sm:$0xff]
    %v271 = vld [vmem:[#allocation8 + $0x38] sm:$0xff]
    %v272 = vld [vmem:[#allocation8 + $0x40] sm:$0xff]
    %v273 = vld [vmem:[#allocation8 + $0x48] sm:$0xff]
    %v274 = vld [vmem:[#allocation8 + $0x50] sm:$0xff]
    %v275 = vld [vmem:[#allocation8 + $0x58] sm:$0xff]
    %v276 = vld [vmem:[#allocation8 + $0x60] sm:$0xff]
    %v277 = vld [vmem:[#allocation8 + $0x68] sm:$0xff]
    %v278 = vld [vmem:[#allocation8 + $0x70] sm:$0xff]
    %v279 = vld [vmem:[#allocation8 + $0x78] sm:$0xff]
    %v280 = vld [vmem:[#allocation8 + $0x80] sm:$0xff]
    %v281 = vld [vmem:[#allocation8 + $0x88] sm:$0xff]
    %v282 = vld [vmem:[#allocation8 + $0x90] sm:$0xff]
    %v283 = vld [vmem:[#allocation8 + $0x98] sm:$0xff]
    %v284 = vld [vmem:[#allocation8 + $0xa0] sm:$0xff]
    %v285 = vld [vmem:[#allocation8 + $0xa8] sm:$0xff]
    %v286 = vld [vmem:[#allocation8 + $0xb0] sm:$0xff]
    %v287 = vld [vmem:[#allocation8 + $0xb8] sm:$0xff]
    %v288 = vld [vmem:[#allocation8 + $0xc0] sm:$0xff]
    %v289 = vld [vmem:[#allocation8 + $0xc8] sm:$0xff]
    %v290 = vld [vmem:[#allocation8 + $0xd0] sm:$0xff]
    %v291 = vld [vmem:[#allocation8 + $0xd8] sm:$0xff]
    %v292 = vld [vmem:[#allocation8 + $0xe0] sm:$0xff]
    %v293 = vld [vmem:[#allocation8 + $0xe8] sm:$0xff]
    %v294 = vld [vmem:[#allocation8 + $0xf0] sm:$0xff]
    %v295 = vld [vmem:[#allocation8 + $0xf8] sm:$0xff]
    %v296 = vld [vmem:[#allocation8 + $0x100] sm:$0xff]
    %v297 = vld [vmem:[#allocation8 + $0x108] sm:$0xff]
    %v298 = vld [vmem:[#allocation8 + $0x110] sm:$0xff]
    %v299 = vld [vmem:[#allocation8 + $0x118] sm:$0xff]
    %v300 = vld [vmem:[#allocation8 + $0x120] sm:$0xff]
    %v301 = vld [vmem:[#allocation8 + $0x128] sm:$0xff]
    %v302 = vld [vmem:[#allocation8 + $0x130] sm:$0xff]
    %v303 = vld [vmem:[#allocation8 + $0x138] sm:$0xff]
    %v304 = vld [vmem:[#allocation8 + $0x140] sm:$0xff]
    %v305 = vld [vmem:[#allocation8 + $0x148] sm:$0xff]
    %v306 = vld [vmem:[#allocation8 + $0x150] sm:$0xff]
    %v307 = vld [vmem:[#allocation8 + $0x158] sm:$0xff]
    %v308 = vld [vmem:[#allocation8 + $0x160] sm:$0xff]
    %v309 = vld [vmem:[#allocation8 + $0x168] sm:$0xff]
    %v310 = vld [vmem:[#allocation8 + $0x170] sm:$0xff]
    %v311 = vld [vmem:[#allocation8 + $0x178] sm:$0xff]
    %v312 = vld [vmem:[#allocation8 + $0x180] sm:$0xff]
    %v313 = vld [vmem:[#allocation8 + $0x188] sm:$0xff]
    %v314 = vld [vmem:[#allocation8 + $0x190] sm:$0xff]
    %v315 = vld [vmem:[#allocation8 + $0x198] sm:$0xff]
    %v316 = vld [vmem:[#allocation8 + $0x1a0] sm:$0xff]
    %v317 = vld [vmem:[#allocation8 + $0x1a8] sm:$0xff]
    %v318 = vld [vmem:[#allocation8 + $0x1b0] sm:$0xff]
    %v319 = vld [vmem:[#allocation8 + $0x1b8] sm:$0xff]
    %v320 = vld [vmem:[#allocation8 + $0x1c0] sm:$0xff]
    %v321 = vld [vmem:[#allocation8 + $0x1c8] sm:$0xff]
    %v322 = vld [vmem:[#allocation8 + $0x1d0] sm:$0xff]
    %v323 = vld [vmem:[#allocation8 + $0x1d8] sm:$0xff]
    %v324 = vld [vmem:[#allocation8 + $0x1e0] sm:$0xff]
    %v325 = vld [vmem:[#allocation8 + $0x1e8] sm:$0xff]
    %v326 = vld [vmem:[#allocation8 + $0x1f0] sm:$0xff]
    %v327 = vld [vmem:[#allocation8 + $0x1f8] sm:$0xff]
    %v328 = vld [vmem:[%s1] sm:$0xf]
    %v330 = vperm.slane %v328, 0
    %v331 = vperm.slane %v328, 1
    %v332 = vperm.slane %v328, 2
    %v333 = vperm.slane %v328, 3
    %v354 = vunpack.c.l.b16 %v248
    %v355 = vunpack.c.h.b16 %v248
    %v356 = vunpack.c.l.b16 %v249
    %v357 = vunpack.c.h.b16 %v249
    %v358 = vunpack.c.l.b16 %v250
    %v359 = vunpack.c.h.b16 %v250
    %v360 = vunpack.c.l.b16 %v251
    %v361 = vunpack.c.h.b16 %v251
    %v362 = vunpack.c.l.b16 %v252
    %v363 = vunpack.c.h.b16 %v252
    %v364 = vunpack.c.l.b16 %v253
    %v365 = vunpack.c.h.b16 %v253
    %v366 = vunpack.c.l.b16 %v254
    %v367 = vunpack.c.h.b16 %v254
    %v368 = vunpack.c.l.b16 %v255
    %v369 = vunpack.c.h.b16 %v255
    %v370 = vunpack.c.l.b16 %v256
    %v371 = vunpack.c.h.b16 %v256
    %v372 = vunpack.c.l.b16 %v257
    %v373 = vunpack.c.h.b16 %v257
    %v374 = vunpack.c.l.b16 %v258
    %v375 = vunpack.c.h.b16 %v258
    %v376 = vunpack.c.l.b16 %v259
    %v377 = vunpack.c.h.b16 %v259
    %v378 = vunpack.c.l.b16 %v260
    %v379 = vunpack.c.h.b16 %v260
    %v380 = vunpack.c.l.b16 %v261
    %v381 = vunpack.c.h.b16 %v261
    %v382 = vunpack.c.l.b16 %v262
    %v383 = vunpack.c.h.b16 %v262
    %v384 = vunpack.c.l.b16 %v263
    %v385 = vunpack.c.h.b16 %v263
    %v386 = vpack.c.b16 %v356, %v354
    %v387 = vpack.c.b16 %v357, %v355
    %v388 = vpack.c.b16 %v360, %v358
    %v389 = vpack.c.b16 %v361, %v359
    %v390 = vpack.c.b16 %v364, %v362
    %v391 = vpack.c.b16 %v365, %v363
    %v392 = vpack.c.b16 %v368, %v366
    %v393 = vpack.c.b16 %v369, %v367
    %v394 = vpack.c.b16 %v372, %v370
    %v395 = vpack.c.b16 %v373, %v371
    %v396 = vpack.c.b16 %v376, %v374
    %v397 = vpack.c.b16 %v377, %v375
    %v398 = vpack.c.b16 %v380, %v378
    %v399 = vpack.c.b16 %v381, %v379
    %v400 = vpack.c.b16 %v384, %v382
    %v401 = vpack.c.b16 %v385, %v383
    %v482 = vunpack.c.l.b16 %v264
    %v483 = vunpack.c.h.b16 %v264
    %v484 = vunpack.c.l.b16 %v265
    %v485 = vunpack.c.h.b16 %v265
    %v486 = vunpack.c.l.b16 %v266
    %v487 = vunpack.c.h.b16 %v266
    %v488 = vunpack.c.l.b16 %v267
    %v489 = vunpack.c.h.b16 %v267
    %v490 = vunpack.c.l.b16 %v268
    %v491 = vunpack.c.h.b16 %v268
    %v492 = vunpack.c.l.b16 %v269
    %v493 = vunpack.c.h.b16 %v269
    %v494 = vunpack.c.l.b16 %v270
    %v495 = vunpack.c.h.b16 %v270
    %v496 = vunpack.c.l.b16 %v271
    %v497 = vunpack.c.h.b16 %v271
    %v498 = vunpack.c.l.b16 %v272
    %v499 = vunpack.c.h.b16 %v272
    %v500 = vunpack.c.l.b16 %v273
    %v501 = vunpack.c.h.b16 %v273
    %v502 = vunpack.c.l.b16 %v274
    %v503 = vunpack.c.h.b16 %v274
    %v504 = vunpack.c.l.b16 %v275
    %v505 = vunpack.c.h.b16 %v275
    %v506 = vunpack.c.l.b16 %v276
    %v507 = vunpack.c.h.b16 %v276
    %v508 = vunpack.c.l.b16 %v277
    %v509 = vunpack.c.h.b16 %v277
    %v510 = vunpack.c.l.b16 %v278
    %v511 = vunpack.c.h.b16 %v278
    %v512 = vunpack.c.l.b16 %v279
    %v513 = vunpack.c.h.b16 %v279
    %v514 = vunpack.c.l.b16 %v280
    %v515 = vunpack.c.h.b16 %v280
    %v516 = vunpack.c.l.b16 %v281
    %v517 = vunpack.c.h.b16 %v281
    %v518 = vunpack.c.l.b16 %v282
    %v519 = vunpack.c.h.b16 %v282
    %v520 = vunpack.c.l.b16 %v283
    %v521 = vunpack.c.h.b16 %v283
    %v522 = vunpack.c.l.b16 %v284
    %v523 = vunpack.c.h.b16 %v284
    %v524 = vunpack.c.l.b16 %v285
    %v525 = vunpack.c.h.b16 %v285
    %v526 = vunpack.c.l.b16 %v286
    %v527 = vunpack.c.h.b16 %v286
    %v528 = vunpack.c.l.b16 %v287
    %v529 = vunpack.c.h.b16 %v287
    %v530 = vunpack.c.l.b16 %v288
    %v531 = vunpack.c.h.b16 %v288
    %v532 = vunpack.c.l.b16 %v289
    %v533 = vunpack.c.h.b16 %v289
    %v534 = vunpack.c.l.b16 %v290
    %v535 = vunpack.c.h.b16 %v290
    %v536 = vunpack.c.l.b16 %v291
    %v537 = vunpack.c.h.b16 %v291
    %v538 = vunpack.c.l.b16 %v292
    %v539 = vunpack.c.h.b16 %v292
    %v540 = vunpack.c.l.b16 %v293
    %v541 = vunpack.c.h.b16 %v293
    %v542 = vunpack.c.l.b16 %v294
    %v543 = vunpack.c.h.b16 %v294
    %v544 = vunpack.c.l.b16 %v295
    %v545 = vunpack.c.h.b16 %v295
    %v546 = vunpack.c.l.b16 %v296
    %v547 = vunpack.c.h.b16 %v296
    %v548 = vunpack.c.l.b16 %v297
    %v549 = vunpack.c.h.b16 %v297
    %v550 = vunpack.c.l.b16 %v298
    %v551 = vunpack.c.h.b16 %v298
    %v552 = vunpack.c.l.b16 %v299
    %v553 = vunpack.c.h.b16 %v299
    %v554 = vunpack.c.l.b16 %v300
    %v555 = vunpack.c.h.b16 %v300
    %v556 = vunpack.c.l.b16 %v301
    %v557 = vunpack.c.h.b16 %v301
    %v558 = vunpack.c.l.b16 %v302
    %v559 = vunpack.c.h.b16 %v302
    %v560 = vunpack.c.l.b16 %v303
    %v561 = vunpack.c.h.b16 %v303
    %v562 = vunpack.c.l.b16 %v304
    %v563 = vunpack.c.h.b16 %v304
    %v564 = vunpack.c.l.b16 %v305
    %v565 = vunpack.c.h.b16 %v305
    %v566 = vunpack.c.l.b16 %v306
    %v567 = vunpack.c.h.b16 %v306
    %v568 = vunpack.c.l.b16 %v307
    %v569 = vunpack.c.h.b16 %v307
    %v570 = vunpack.c.l.b16 %v308
    %v571 = vunpack.c.h.b16 %v308
    %v572 = vunpack.c.l.b16 %v309
    %v573 = vunpack.c.h.b16 %v309
    %v574 = vunpack.c.l.b16 %v310
    %v575 = vunpack.c.h.b16 %v310
    %v576 = vunpack.c.l.b16 %v311
    %v577 = vunpack.c.h.b16 %v311
    %v578 = vunpack.c.l.b16 %v312
    %v579 = vunpack.c.h.b16 %v312
    %v580 = vunpack.c.l.b16 %v313
    %v581 = vunpack.c.h.b16 %v313
    %v582 = vunpack.c.l.b16 %v314
    %v583 = vunpack.c.h.b16 %v314
    %v584 = vunpack.c.l.b16 %v315
    %v585 = vunpack.c.h.b16 %v315
    %v586 = vunpack.c.l.b16 %v316
    %v587 = vunpack.c.h.b16 %v316
    %v588 = vunpack.c.l.b16 %v317
    %v589 = vunpack.c.h.b16 %v317
    %v590 = vunpack.c.l.b16 %v318
    %v591 = vunpack.c.h.b16 %v318
    %v592 = vunpack.c.l.b16 %v319
    %v593 = vunpack.c.h.b16 %v319
    %v594 = vunpack.c.l.b16 %v320
    %v595 = vunpack.c.h.b16 %v320
    %v596 = vunpack.c.l.b16 %v321
    %v597 = vunpack.c.h.b16 %v321
    %v598 = vunpack.c.l.b16 %v322
    %v599 = vunpack.c.h.b16 %v322
    %v600 = vunpack.c.l.b16 %v323
    %v601 = vunpack.c.h.b16 %v323
    %v602 = vunpack.c.l.b16 %v324
    %v603 = vunpack.c.h.b16 %v324
    %v604 = vunpack.c.l.b16 %v325
    %v605 = vunpack.c.h.b16 %v325
    %v606 = vunpack.c.l.b16 %v326
    %v607 = vunpack.c.h.b16 %v326
    %v608 = vunpack.c.l.b16 %v327
    %v609 = vunpack.c.h.b16 %v327
    %v610 = vpack.c.b16 %v486, %v482
    %v611 = vpack.c.b16 %v487, %v483
    %v612 = vpack.c.b16 %v488, %v484
    %v613 = vpack.c.b16 %v489, %v485
    %v614 = vpack.c.b16 %v494, %v490
    %v615 = vpack.c.b16 %v495, %v491
    %v616 = vpack.c.b16 %v496, %v492
    %v617 = vpack.c.b16 %v497, %v493
    %v618 = vpack.c.b16 %v502, %v498
    %v619 = vpack.c.b16 %v503, %v499
    %v620 = vpack.c.b16 %v504, %v500
    %v621 = vpack.c.b16 %v505, %v501
    %v622 = vpack.c.b16 %v510, %v506
    %v623 = vpack.c.b16 %v511, %v507
    %v624 = vpack.c.b16 %v512, %v508
    %v625 = vpack.c.b16 %v513, %v509
    %v626 = vpack.c.b16 %v518, %v514
    %v627 = vpack.c.b16 %v519, %v515
    %v628 = vpack.c.b16 %v520, %v516
    %v629 = vpack.c.b16 %v521, %v517
    %v630 = vpack.c.b16 %v526, %v522
    %v631 = vpack.c.b16 %v527, %v523
    %v632 = vpack.c.b16 %v528, %v524
    %v633 = vpack.c.b16 %v529, %v525
    %v634 = vpack.c.b16 %v534, %v530
    %v635 = vpack.c.b16 %v535, %v531
    %v636 = vpack.c.b16 %v536, %v532
    %v637 = vpack.c.b16 %v537, %v533
    %v638 = vpack.c.b16 %v542, %v538
    %v639 = vpack.c.b16 %v543, %v539
    %v640 = vpack.c.b16 %v544, %v540
    %v641 = vpack.c.b16 %v545, %v541
    %v642 = vpack.c.b16 %v550, %v546
    %v643 = vpack.c.b16 %v551, %v547
    %v644 = vpack.c.b16 %v552, %v548
    %v645 = vpack.c.b16 %v553, %v549
    %v646 = vpack.c.b16 %v558, %v554
    %v647 = vpack.c.b16 %v559, %v555
    %v648 = vpack.c.b16 %v560, %v556
    %v649 = vpack.c.b16 %v561, %v557
    %v650 = vpack.c.b16 %v566, %v562
    %v651 = vpack.c.b16 %v567, %v563
    %v652 = vpack.c.b16 %v568, %v564
    %v653 = vpack.c.b16 %v569, %v565
    %v654 = vpack.c.b16 %v574, %v570
    %v655 = vpack.c.b16 %v575, %v571
    %v656 = vpack.c.b16 %v576, %v572
    %v657 = vpack.c.b16 %v577, %v573
    %v658 = vpack.c.b16 %v582, %v578
    %v659 = vpack.c.b16 %v583, %v579
    %v660 = vpack.c.b16 %v584, %v580
    %v661 = vpack.c.b16 %v585, %v581
    %v662 = vpack.c.b16 %v590, %v586
    %v663 = vpack.c.b16 %v591, %v587
    %v664 = vpack.c.b16 %v592, %v588
    %v665 = vpack.c.b16 %v593, %v589
    %v666 = vpack.c.b16 %v598, %v594
    %v667 = vpack.c.b16 %v599, %v595
    %v668 = vpack.c.b16 %v600, %v596
    %v669 = vpack.c.b16 %v601, %v597
    %v670 = vpack.c.b16 %v606, %v602
    %v671 = vpack.c.b16 %v607, %v603
    %v672 = vpack.c.b16 %v608, %v604
    %v673 = vpack.c.b16 %v609, %v605
    %738 = vmatpush.bf16.msra.mxu0 %v638
    %739 = vmatpush.bf16.msra.mxu0 %v634
    %740 = vmatpush.bf16.msra.mxu0 %v630
    %741 = vmatpush.bf16.msra.mxu0 %v626
    %742 = vmatpush.bf16.msra.mxu0 %v622
    %743 = vmatpush.bf16.msra.mxu0 %v618
    %744 = vmatpush.bf16.msra.mxu0 %v614
    %745 = vmatpush.bf16.msra.mxu0 %v610
    %746 = vmatmul.bf16.gmra.mxu0 %v386
    %v747 = vpop.f32.mrf.mxu0
    %v748 = vadd.f32 %v330, %v747
    %v749 = vpop.f32.mrf.mxu0
    %v750 = vadd.f32 %v330, %v749
    %751 = vmatmul.bf16.gmra.mxu0 %v388
    %v752 = vpop.f32.mrf.mxu0
    %v753 = vadd.f32 %v330, %v752
    %v754 = vpop.f32.mrf.mxu0
    %v755 = vadd.f32 %v330, %v754
    %756 = vmatmul.bf16.gmra.mxu0 %v390
    %v757 = vpop.f32.mrf.mxu0
    %v758 = vadd.f32 %v330, %v757
    %v759 = vpop.f32.mrf.mxu0
    %v760 = vadd.f32 %v330, %v759
    %761 = vmatmul.bf16.gmra.mxu0 %v392
    %v762 = vpop.f32.mrf.mxu0
    %v763 = vadd.f32 %v330, %v762
    %v764 = vpop.f32.mrf.mxu0
    %v765 = vadd.f32 %v330, %v764
    %766 = vmatmul.bf16.gmra.mxu0 %v394
    %v767 = vpop.f32.mrf.mxu0
    %v768 = vadd.f32 %v330, %v767
    %v769 = vpop.f32.mrf.mxu0
    %v770 = vadd.f32 %v330, %v769
    %771 = vmatmul.bf16.gmra.mxu0 %v396
    %v772 = vpop.f32.mrf.mxu0
    %v773 = vadd.f32 %v330, %v772
    %v774 = vpop.f32.mrf.mxu0
    %v775 = vadd.f32 %v330, %v774
    %776 = vmatmul.bf16.gmra.mxu0 %v398
    %v777 = vpop.f32.mrf.mxu0
    %v778 = vadd.f32 %v330, %v777
    %v779 = vpop.f32.mrf.mxu0
    %v780 = vadd.f32 %v330, %v779
    %781 = vmatmul.bf16.gmra.mxu0 %v400
    %v782 = vpop.f32.mrf.mxu0
    %v783 = vadd.f32 %v330, %v782
    %v784 = vpop.f32.mrf.mxu0
    %v785 = vadd.f32 %v330, %v784
    %786 = vdwg.mxu0
    %787 = vmatpush.bf16.msra.mxu0 %v670
    %788 = vmatpush.bf16.msra.mxu0 %v666
    %789 = vmatpush.bf16.msra.mxu0 %v662
    %790 = vmatpush.bf16.msra.mxu0 %v658
    %791 = vmatpush.bf16.msra.mxu0 %v654
    %792 = vmatpush.bf16.msra.mxu0 %v650
    %793 = vmatpush.bf16.msra.mxu0 %v646
    %794 = vmatpush.bf16.msra.mxu0 %v642
    %795 = vmatmul.bf16.gmra.mxu0 %v387
    %v796 = vpop.f32.mrf.mxu0
    %v797 = vadd.f32 %v748, %v796
    %v798 = vpop.f32.mrf.mxu0
    %v799 = vadd.f32 %v750, %v798
    %800 = vmatmul.bf16.gmra.mxu0 %v389
    %v801 = vpop.f32.mrf.mxu0
    %v802 = vadd.f32 %v753, %v801
    %v803 = vpop.f32.mrf.mxu0
    %v804 = vadd.f32 %v755, %v803
    %805 = vmatmul.bf16.gmra.mxu0 %v391
    %v806 = vpop.f32.mrf.mxu0
    %v807 = vadd.f32 %v758, %v806
    %v808 = vpop.f32.mrf.mxu0
    %v809 = vadd.f32 %v760, %v808
    %810 = vmatmul.bf16.gmra.mxu0 %v393
    %v811 = vpop.f32.mrf.mxu0
    %v812 = vadd.f32 %v763, %v811
    %v813 = vpop.f32.mrf.mxu0
    %v814 = vadd.f32 %v765, %v813
    %815 = vmatmul.bf16.gmra.mxu0 %v395
    %v816 = vpop.f32.mrf.mxu0
    %v817 = vadd.f32 %v768, %v816
    %v818 = vpop.f32.mrf.mxu0
    %v819 = vadd.f32 %v770, %v818
    %820 = vmatmul.bf16.gmra.mxu0 %v397
    %v821 = vpop.f32.mrf.mxu0
    %v822 = vadd.f32 %v773, %v821
    %v823 = vpop.f32.mrf.mxu0
    %v824 = vadd.f32 %v775, %v823
    %825 = vmatmul.bf16.gmra.mxu0 %v399
    %v826 = vpop.f32.mrf.mxu0
    %v827 = vadd.f32 %v778, %v826
    %v828 = vpop.f32.mrf.mxu0
    %v829 = vadd.f32 %v780, %v828
    %830 = vmatmul.bf16.gmra.mxu0 %v401
    %v831 = vpop.f32.mrf.mxu0
    %v832 = vadd.f32 %v783, %v831
    %v833 = vpop.f32.mrf.mxu0
    %v834 = vadd.f32 %v785, %v833
    %835 = vdwg.mxu0
    %836 = vmatpush.bf16.msra.mxu0 %v639
    %837 = vmatpush.bf16.msra.mxu0 %v635
    %838 = vmatpush.bf16.msra.mxu0 %v631
    %839 = vmatpush.bf16.msra.mxu0 %v627
    %840 = vmatpush.bf16.msra.mxu0 %v623
    %841 = vmatpush.bf16.msra.mxu0 %v619
    %842 = vmatpush.bf16.msra.mxu0 %v615
    %843 = vmatpush.bf16.msra.mxu0 %v611
    %844 = vmatmul.bf16.gmra.mxu0 %v386
    %v845 = vpop.f32.mrf.mxu0
    %v846 = vadd.f32 %v331, %v845
    %v847 = vpop.f32.mrf.mxu0
    %v848 = vadd.f32 %v331, %v847
    %849 = vmatmul.bf16.gmra.mxu0 %v388
    %v850 = vpop.f32.mrf.mxu0
    %v851 = vadd.f32 %v331, %v850
    %v852 = vpop.f32.mrf.mxu0
    %v853 = vadd.f32 %v331, %v852
    %854 = vmatmul.bf16.gmra.mxu0 %v390
    %v855 = vpop.f32.mrf.mxu0
    %v856 = vadd.f32 %v331, %v855
    %v857 = vpop.f32.mrf.mxu0
    %v858 = vadd.f32 %v331, %v857
    %859 = vmatmul.bf16.gmra.mxu0 %v392
    %v860 = vpop.f32.mrf.mxu0
    %v861 = vadd.f32 %v331, %v860
    %v862 = vpop.f32.mrf.mxu0
    %v863 = vadd.f32 %v331, %v862
    %864 = vmatmul.bf16.gmra.mxu0 %v394
    %v865 = vpop.f32.mrf.mxu0
    %v866 = vadd.f32 %v331, %v865
    %v867 = vpop.f32.mrf.mxu0
    %v868 = vadd.f32 %v331, %v867
    %869 = vmatmul.bf16.gmra.mxu0 %v396
    %v870 = vpop.f32.mrf.mxu0
    %v871 = vadd.f32 %v331, %v870
    %v872 = vpop.f32.mrf.mxu0
    %v873 = vadd.f32 %v331, %v872
    %874 = vmatmul.bf16.gmra.mxu0 %v398
    %v875 = vpop.f32.mrf.mxu0
    %v876 = vadd.f32 %v331, %v875
    %v877 = vpop.f32.mrf.mxu0
    %v878 = vadd.f32 %v331, %v877
    %879 = vmatmul.bf16.gmra.mxu0 %v400
    %v880 = vpop.f32.mrf.mxu0
    %v881 = vadd.f32 %v331, %v880
    %v882 = vpop.f32.mrf.mxu0
    %v883 = vadd.f32 %v331, %v882
    %884 = vdwg.mxu0
    %885 = vmatpush.bf16.msra.mxu0 %v671
    %886 = vmatpush.bf16.msra.mxu0 %v667
    %887 = vmatpush.bf16.msra.mxu0 %v663
    %888 = vmatpush.bf16.msra.mxu0 %v659
    %889 = vmatpush.bf16.msra.mxu0 %v655
    %890 = vmatpush.bf16.msra.mxu0 %v651
    %891 = vmatpush.bf16.msra.mxu0 %v647
    %892 = vmatpush.bf16.msra.mxu0 %v643
    %893 = vmatmul.bf16.gmra.mxu0 %v387
    %v894 = vpop.f32.mrf.mxu0
    %v895 = vadd.f32 %v846, %v894
    %v896 = vpop.f32.mrf.mxu0
    %v897 = vadd.f32 %v848, %v896
    %898 = vmatmul.bf16.gmra.mxu0 %v389
    %v899 = vpop.f32.mrf.mxu0
    %v900 = vadd.f32 %v851, %v899
    %v901 = vpop.f32.mrf.mxu0
    %v902 = vadd.f32 %v853, %v901
    %903 = vmatmul.bf16.gmra.mxu0 %v391
    %v904 = vpop.f32.mrf.mxu0
    %v905 = vadd.f32 %v856, %v904
    %v906 = vpop.f32.mrf.mxu0
    %v907 = vadd.f32 %v858, %v906
    %908 = vmatmul.bf16.gmra.mxu0 %v393
    %v909 = vpop.f32.mrf.mxu0
    %v910 = vadd.f32 %v861, %v909
    %v911 = vpop.f32.mrf.mxu0
    %v912 = vadd.f32 %v863, %v911
    %913 = vmatmul.bf16.gmra.mxu0 %v395
    %v914 = vpop.f32.mrf.mxu0
    %v915 = vadd.f32 %v866, %v914
    %v916 = vpop.f32.mrf.mxu0
    %v917 = vadd.f32 %v868, %v916
    %918 = vmatmul.bf16.gmra.mxu0 %v397
    %v919 = vpop.f32.mrf.mxu0
    %v920 = vadd.f32 %v871, %v919
    %v921 = vpop.f32.mrf.mxu0
    %v922 = vadd.f32 %v873, %v921
    %923 = vmatmul.bf16.gmra.mxu0 %v399
    %v924 = vpop.f32.mrf.mxu0
    %v925 = vadd.f32 %v876, %v924
    %v926 = vpop.f32.mrf.mxu0
    %v927 = vadd.f32 %v878, %v926
    %928 = vmatmul.bf16.gmra.mxu0 %v401
    %v929 = vpop.f32.mrf.mxu0
    %v930 = vadd.f32 %v881, %v929
    %v931 = vpop.f32.mrf.mxu0
    %v932 = vadd.f32 %v883, %v931
    %933 = vdwg.mxu0
    %934 = vmatpush.bf16.msra.mxu0 %v640
    %935 = vmatpush.bf16.msra.mxu0 %v636
    %936 = vmatpush.bf16.msra.mxu0 %v632
    %937 = vmatpush.bf16.msra.mxu0 %v628
    %938 = vmatpush.bf16.msra.mxu0 %v624
    %939 = vmatpush.bf16.msra.mxu0 %v620
    %940 = vmatpush.bf16.msra.mxu0 %v616
    %941 = vmatpush.bf16.msra.mxu0 %v612
    %942 = vmatmul.bf16.gmra.mxu0 %v386
    %v943 = vpop.f32.mrf.mxu0
    %v944 = vadd.f32 %v332, %v943
    %v945 = vpop.f32.mrf.mxu0
    %v946 = vadd.f32 %v332, %v945
    %947 = vmatmul.bf16.gmra.mxu0 %v388
    %v948 = vpop.f32.mrf.mxu0
    %v949 = vadd.f32 %v332, %v948
    %v950 = vpop.f32.mrf.mxu0
    %v951 = vadd.f32 %v332, %v950
    %952 = vmatmul.bf16.gmra.mxu0 %v390
    %v953 = vpop.f32.mrf.mxu0
    %v954 = vadd.f32 %v332, %v953
    %v955 = vpop.f32.mrf.mxu0
    %v956 = vadd.f32 %v332, %v955
    %957 = vmatmul.bf16.gmra.mxu0 %v392
    %v958 = vpop.f32.mrf.mxu0
    %v959 = vadd.f32 %v332, %v958
    %v960 = vpop.f32.mrf.mxu0
    %v961 = vadd.f32 %v332, %v960
    %962 = vmatmul.bf16.gmra.mxu0 %v394
    %v963 = vpop.f32.mrf.mxu0
    %v964 = vadd.f32 %v332, %v963
    %v965 = vpop.f32.mrf.mxu0
    %v966 = vadd.f32 %v332, %v965
    %967 = vmatmul.bf16.gmra.mxu0 %v396
    %v968 = vpop.f32.mrf.mxu0
    %v969 = vadd.f32 %v332, %v968
    %v970 = vpop.f32.mrf.mxu0
    %v971 = vadd.f32 %v332, %v970
    %972 = vmatmul.bf16.gmra.mxu0 %v398
    %v973 = vpop.f32.mrf.mxu0
    %v974 = vadd.f32 %v332, %v973
    %v975 = vpop.f32.mrf.mxu0
    %v976 = vadd.f32 %v332, %v975
    %977 = vmatmul.bf16.gmra.mxu0 %v400
    %v978 = vpop.f32.mrf.mxu0
    %v979 = vadd.f32 %v332, %v978
    %v980 = vpop.f32.mrf.mxu0
    %v981 = vadd.f32 %v332, %v980
    %982 = vdwg.mxu0
    %983 = vmatpush.bf16.msra.mxu0 %v672
    %984 = vmatpush.bf16.msra.mxu0 %v668
    %985 = vmatpush.bf16.msra.mxu0 %v664
    %986 = vmatpush.bf16.msra.mxu0 %v660
    %987 = vmatpush.bf16.msra.mxu0 %v656
    %988 = vmatpush.bf16.msra.mxu0 %v652
    %989 = vmatpush.bf16.msra.mxu0 %v648
    %990 = vmatpush.bf16.msra.mxu0 %v644
    %991 = vmatmul.bf16.gmra.mxu0 %v387
    %v992 = vpop.f32.mrf.mxu0
    %v993 = vadd.f32 %v944, %v992
    %v994 = vpop.f32.mrf.mxu0
    %v995 = vadd.f32 %v946, %v994
    %996 = vmatmul.bf16.gmra.mxu0 %v389
    %v997 = vpop.f32.mrf.mxu0
    %v998 = vadd.f32 %v949, %v997
    %v999 = vpop.f32.mrf.mxu0
    %v1000 = vadd.f32 %v951, %v999
    %1001 = vmatmul.bf16.gmra.mxu0 %v391
    %v1002 = vpop.f32.mrf.mxu0
    %v1003 = vadd.f32 %v954, %v1002
    %v1004 = vpop.f32.mrf.mxu0
    %v1005 = vadd.f32 %v956, %v1004
    %1006 = vmatmul.bf16.gmra.mxu0 %v393
    %v1007 = vpop.f32.mrf.mxu0
    %v1008 = vadd.f32 %v959, %v1007
    %v1009 = vpop.f32.mrf.mxu0
    %v1010 = vadd.f32 %v961, %v1009
    %1011 = vmatmul.bf16.gmra.mxu0 %v395
    %v1012 = vpop.f32.mrf.mxu0
    %v1013 = vadd.f32 %v964, %v1012
    %v1014 = vpop.f32.mrf.mxu0
    %v1015 = vadd.f32 %v966, %v1014
    %1016 = vmatmul.bf16.gmra.mxu0 %v397
    %v1017 = vpop.f32.mrf.mxu0
    %v1018 = vadd.f32 %v969, %v1017
    %v1019 = vpop.f32.mrf.mxu0
    %v1020 = vadd.f32 %v971, %v1019
    %1021 = vmatmul.bf16.gmra.mxu0 %v399
    %v1022 = vpop.f32.mrf.mxu0
    %v1023 = vadd.f32 %v974, %v1022
    %v1024 = vpop.f32.mrf.mxu0
    %v1025 = vadd.f32 %v976, %v1024
    %1026 = vmatmul.bf16.gmra.mxu0 %v401
    %v1027 = vpop.f32.mrf.mxu0
    %v1028 = vadd.f32 %v979, %v1027
    %v1029 = vpop.f32.mrf.mxu0
    %v1030 = vadd.f32 %v981, %v1029
    %1031 = vdwg.mxu0
    %1032 = vmatpush.bf16.msra.mxu0 %v641
    %1033 = vmatpush.bf16.msra.mxu0 %v637
    %1034 = vmatpush.bf16.msra.mxu0 %v633
    %1035 = vmatpush.bf16.msra.mxu0 %v629
    %1036 = vmatpush.bf16.msra.mxu0 %v625
    %1037 = vmatpush.bf16.msra.mxu0 %v621
    %1038 = vmatpush.bf16.msra.mxu0 %v617
    %1039 = vmatpush.bf16.msra.mxu0 %v613
    %1040 = vmatmul.bf16.gmra.mxu0 %v386
    %v1041 = vpop.f32.mrf.mxu0
    %v1042 = vadd.f32 %v333, %v1041
    %v1043 = vpop.f32.mrf.mxu0
    %v1044 = vadd.f32 %v333, %v1043
    %1045 = vmatmul.bf16.gmra.mxu0 %v388
    %v1046 = vpop.f32.mrf.mxu0
    %v1047 = vadd.f32 %v333, %v1046
    %v1048 = vpop.f32.mrf.mxu0
    %v1049 = vadd.f32 %v333, %v1048
    %1050 = vmatmul.bf16.gmra.mxu0 %v390
    %v1051 = vpop.f32.mrf.mxu0
    %v1052 = vadd.f32 %v333, %v1051
    %v1053 = vpop.f32.mrf.mxu0
    %v1054 = vadd.f32 %v333, %v1053
    %1055 = vmatmul.bf16.gmra.mxu0 %v392
    %v1056 = vpop.f32.mrf.mxu0
    %v1057 = vadd.f32 %v333, %v1056
    %v1058 = vpop.f32.mrf.mxu0
    %v1059 = vadd.f32 %v333, %v1058
    %1060 = vmatmul.bf16.gmra.mxu0 %v394
    %v1061 = vpop.f32.mrf.mxu0
    %v1062 = vadd.f32 %v333, %v1061
    %v1063 = vpop.f32.mrf.mxu0
    %v1064 = vadd.f32 %v333, %v1063
    %1065 = vmatmul.bf16.gmra.mxu0 %v396
    %v1066 = vpop.f32.mrf.mxu0
    %v1067 = vadd.f32 %v333, %v1066
    %v1068 = vpop.f32.mrf.mxu0
    %v1069 = vadd.f32 %v333, %v1068
    %1070 = vmatmul.bf16.gmra.mxu0 %v398
    %v1071 = vpop.f32.mrf.mxu0
    %v1072 = vadd.f32 %v333, %v1071
    %v1073 = vpop.f32.mrf.mxu0
    %v1074 = vadd.f32 %v333, %v1073
    %1075 = vmatmul.bf16.gmra.mxu0 %v400
    %v1076 = vpop.f32.mrf.mxu0
    %v1077 = vadd.f32 %v333, %v1076
    %v1078 = vpop.f32.mrf.mxu0
    %v1079 = vadd.f32 %v333, %v1078
    %1080 = vdwg.mxu0
    %1081 = vmatpush.bf16.msra.mxu0 %v673
    %1082 = vmatpush.bf16.msra.mxu0 %v669
    %1083 = vmatpush.bf16.msra.mxu0 %v665
    %1084 = vmatpush.bf16.msra.mxu0 %v661
    %1085 = vmatpush.bf16.msra.mxu0 %v657
    %1086 = vmatpush.bf16.msra.mxu0 %v653
    %1087 = vmatpush.bf16.msra.mxu0 %v649
    %1088 = vmatpush.bf16.msra.mxu0 %v645
    %1089 = vmatmul.bf16.gmra.mxu0 %v387
    %v1090 = vpop.f32.mrf.mxu0
    %v1091 = vadd.f32 %v1042, %v1090
    %v1092 = vpop.f32.mrf.mxu0
    %v1093 = vadd.f32 %v1044, %v1092
    %1094 = vmatmul.bf16.gmra.mxu0 %v389
    %v1095 = vpop.f32.mrf.mxu0
    %v1096 = vadd.f32 %v1047, %v1095
    %v1097 = vpop.f32.mrf.mxu0
    %v1098 = vadd.f32 %v1049, %v1097
    %1099 = vmatmul.bf16.gmra.mxu0 %v391
    %v1100 = vpop.f32.mrf.mxu0
    %v1101 = vadd.f32 %v1052, %v1100
    %v1102 = vpop.f32.mrf.mxu0
    %v1103 = vadd.f32 %v1054, %v1102
    %1104 = vmatmul.bf16.gmra.mxu0 %v393
    %v1105 = vpop.f32.mrf.mxu0
    %v1106 = vadd.f32 %v1057, %v1105
    %v1107 = vpop.f32.mrf.mxu0
    %v1108 = vadd.f32 %v1059, %v1107
    %1109 = vmatmul.bf16.gmra.mxu0 %v395
    %v1110 = vpop.f32.mrf.mxu0
    %v1111 = vadd.f32 %v1062, %v1110
    %v1112 = vpop.f32.mrf.mxu0
    %v1113 = vadd.f32 %v1064, %v1112
    %1114 = vmatmul.bf16.gmra.mxu0 %v397
    %v1115 = vpop.f32.mrf.mxu0
    %v1116 = vadd.f32 %v1067, %v1115
    %v1117 = vpop.f32.mrf.mxu0
    %v1118 = vadd.f32 %v1069, %v1117
    %1119 = vmatmul.bf16.gmra.mxu0 %v399
    %v1120 = vpop.f32.mrf.mxu0
    %v1121 = vadd.f32 %v1072, %v1120
    %v1122 = vpop.f32.mrf.mxu0
    %v1123 = vadd.f32 %v1074, %v1122
    %1124 = vmatmul.bf16.gmra.mxu0 %v401
    %v1125 = vpop.f32.mrf.mxu0
    %v1126 = vadd.f32 %v1077, %v1125
    %v1127 = vpop.f32.mrf.mxu0
    %v1128 = vadd.f32 %v1079, %v1127
    %1129 = vdwg.mxu0
    %v1130 = vmax.f32 %v797, 0.0
    %v1131 = vmax.f32 %v895, 0.0
    %v1132 = vmax.f32 %v993, 0.0
    %v1133 = vmax.f32 %v1091, 0.0
    %v1134 = vmax.f32 %v799, 0.0
    %v1135 = vmax.f32 %v897, 0.0
    %v1136 = vmax.f32 %v995, 0.0
    %v1137 = vmax.f32 %v1093, 0.0
    %v1138 = vmax.f32 %v802, 0.0
    %v1139 = vmax.f32 %v900, 0.0
    %v1140 = vmax.f32 %v998, 0.0
    %v1141 = vmax.f32 %v1096, 0.0
    %v1142 = vmax.f32 %v804, 0.0
    %v1143 = vmax.f32 %v902, 0.0
    %v1144 = vmax.f32 %v1000, 0.0
    %v1145 = vmax.f32 %v1098, 0.0
    %v1146 = vmax.f32 %v807, 0.0
    %v1147 = vmax.f32 %v905, 0.0
    %v1148 = vmax.f32 %v1003, 0.0
    %v1149 = vmax.f32 %v1101, 0.0
    %v1150 = vmax.f32 %v809, 0.0
    %v1151 = vmax.f32 %v907, 0.0
    %v1152 = vmax.f32 %v1005, 0.0
    %v1153 = vmax.f32 %v1103, 0.0
    %v1154 = vmax.f32 %v812, 0.0
    %v1155 = vmax.f32 %v910, 0.0
    %v1156 = vmax.f32 %v1008, 0.0
    %v1157 = vmax.f32 %v1106, 0.0
    %v1158 = vmax.f32 %v814, 0.0
    %v1159 = vmax.f32 %v912, 0.0
    %v1160 = vmax.f32 %v1010, 0.0
    %v1161 = vmax.f32 %v1108, 0.0
    %v1162 = vmax.f32 %v817, 0.0
    %v1163 = vmax.f32 %v915, 0.0
    %v1164 = vmax.f32 %v1013, 0.0
    %v1165 = vmax.f32 %v1111, 0.0
    %v1166 = vmax.f32 %v819, 0.0
    %v1167 = vmax.f32 %v917, 0.0
    %v1168 = vmax.f32 %v1015, 0.0
    %v1169 = vmax.f32 %v1113, 0.0
    %v1170 = vmax.f32 %v822, 0.0
    %v1171 = vmax.f32 %v920, 0.0
    %v1172 = vmax.f32 %v1018, 0.0
    %v1173 = vmax.f32 %v1116, 0.0
    %v1174 = vmax.f32 %v824, 0.0
    %v1175 = vmax.f32 %v922, 0.0
    %v1176 = vmax.f32 %v1020, 0.0
    %v1177 = vmax.f32 %v1118, 0.0
    %v1178 = vmax.f32 %v827, 0.0
    %v1179 = vmax.f32 %v925, 0.0
    %v1180 = vmax.f32 %v1023, 0.0
    %v1181 = vmax.f32 %v1121, 0.0
    %v1182 = vmax.f32 %v829, 0.0
    %v1183 = vmax.f32 %v927, 0.0
    %v1184 = vmax.f32 %v1025, 0.0
    %v1185 = vmax.f32 %v1123, 0.0
    %v1186 = vmax.f32 %v832, 0.0
    %v1187 = vmax.f32 %v930, 0.0
    %v1188 = vmax.f32 %v1028, 0.0
    %v1189 = vmax.f32 %v1126, 0.0
    %v1190 = vmax.f32 %v834, 0.0
    %v1191 = vmax.f32 %v932, 0.0
    %v1192 = vmax.f32 %v1030, 0.0
    %v1193 = vmax.f32 %v1128, 0.0
    %v1194 = vpack.c.bf16 %v1134, %v1130
    %v1195 = vpack.c.bf16 %v1135, %v1131
    %v1196 = vpack.c.bf16 %v1136, %v1132
    %v1197 = vpack.c.bf16 %v1137, %v1133
    %v1198 = vpack.c.bf16 %v1142, %v1138
    %v1199 = vpack.c.bf16 %v1143, %v1139
    %v1200 = vpack.c.bf16 %v1144, %v1140
    %v1201 = vpack.c.bf16 %v1145, %v1141
    %v1202 = vpack.c.bf16 %v1150, %v1146
    %v1203 = vpack.c.bf16 %v1151, %v1147
    %v1204 = vpack.c.bf16 %v1152, %v1148
    %v1205 = vpack.c.bf16 %v1153, %v1149
    %v1206 = vpack.c.bf16 %v1158, %v1154
    %v1207 = vpack.c.bf16 %v1159, %v1155
    %v1208 = vpack.c.bf16 %v1160, %v1156
    %v1209 = vpack.c.bf16 %v1161, %v1157
    %v1210 = vpack.c.bf16 %v1166, %v1162
    %v1211 = vpack.c.bf16 %v1167, %v1163
    %v1212 = vpack.c.bf16 %v1168, %v1164
    %v1213 = vpack.c.bf16 %v1169, %v1165
    %v1214 = vpack.c.bf16 %v1174, %v1170
    %v1215 = vpack.c.bf16 %v1175, %v1171
    %v1216 = vpack.c.bf16 %v1176, %v1172
    %v1217 = vpack.c.bf16 %v1177, %v1173
    %v1218 = vpack.c.bf16 %v1182, %v1178
    %v1219 = vpack.c.bf16 %v1183, %v1179
    %v1220 = vpack.c.bf16 %v1184, %v1180
    %v1221 = vpack.c.bf16 %v1185, %v1181
    %v1222 = vpack.c.bf16 %v1190, %v1186
    %v1223 = vpack.c.bf16 %v1191, %v1187
    %v1224 = vpack.c.bf16 %v1192, %v1188
    %v1225 = vpack.c.bf16 %v1193, %v1189
    %v1226 = vld [vmem:[#allocation10] sm:$0xf]
    %v1227 = vld [vmem:[#allocation10 + $0x4] sm:$0xf]
    %v1228 = vld [vmem:[#allocation10 + $0x8] sm:$0xf]
    %v1229 = vld [vmem:[#allocation10 + $0xc] sm:$0xf]
    %v1230 = vld [vmem:[#allocation10 + $0x10] sm:$0xf]
    %v1231 = vld [vmem:[#allocation10 + $0x14] sm:$0xf]
    %v1232 = vld [vmem:[#allocation10 + $0x18] sm:$0xf]
    %v1233 = vld [vmem:[#allocation10 + $0x1c] sm:$0xf]
    %v1234 = vld [vmem:[#allocation10 + $0x20] sm:$0xf]
    %v1235 = vld [vmem:[#allocation10 + $0x24] sm:$0xf]
    %v1236 = vld [vmem:[#allocation10 + $0x28] sm:$0xf]
    %v1237 = vld [vmem:[#allocation10 + $0x2c] sm:$0xf]
    %v1238 = vld [vmem:[#allocation10 + $0x30] sm:$0xf]
    %v1239 = vld [vmem:[#allocation10 + $0x34] sm:$0xf]
    %v1240 = vld [vmem:[#allocation10 + $0x38] sm:$0xf]
    %v1241 = vld [vmem:[#allocation10 + $0x3c] sm:$0xf]
    %v1242 = vld [vmem:[#allocation10 + $0x40] sm:$0xf]
    %v1243 = vld [vmem:[#allocation10 + $0x44] sm:$0xf]
    %v1244 = vld [vmem:[#allocation10 + $0x48] sm:$0xf]
    %v1245 = vld [vmem:[#allocation10 + $0x4c] sm:$0xf]
    %v1246 = vld [vmem:[#allocation10 + $0x50] sm:$0xf]
    %v1247 = vld [vmem:[#allocation10 + $0x54] sm:$0xf]
    %v1248 = vld [vmem:[#allocation10 + $0x58] sm:$0xf]
    %v1249 = vld [vmem:[#allocation10 + $0x5c] sm:$0xf]
    %v1250 = vld [vmem:[#allocation10 + $0x60] sm:$0xf]
    %v1251 = vld [vmem:[#allocation10 + $0x64] sm:$0xf]
    %v1252 = vld [vmem:[#allocation10 + $0x68] sm:$0xf]
    %v1253 = vld [vmem:[#allocation10 + $0x6c] sm:$0xf]
    %v1254 = vld [vmem:[#allocation10 + $0x70] sm:$0xf]
    %v1255 = vld [vmem:[#allocation10 + $0x74] sm:$0xf]
    %v1256 = vld [vmem:[#allocation10 + $0x78] sm:$0xf]
    %v1257 = vld [vmem:[#allocation10 + $0x7c] sm:$0xf]
    %v1258 = vld [vmem:[#allocation10 + $0x80] sm:$0xf]
    %v1259 = vld [vmem:[#allocation10 + $0x84] sm:$0xf]
    %v1260 = vld [vmem:[#allocation10 + $0x88] sm:$0xf]
    %v1261 = vld [vmem:[#allocation10 + $0x8c] sm:$0xf]
    %v1262 = vld [vmem:[#allocation10 + $0x90] sm:$0xf]
    %v1263 = vld [vmem:[#allocation10 + $0x94] sm:$0xf]
    %v1264 = vld [vmem:[#allocation10 + $0x98] sm:$0xf]
    %v1265 = vld [vmem:[#allocation10 + $0x9c] sm:$0xf]
    %v1266 = vld [vmem:[#allocation10 + $0xa0] sm:$0xf]
    %v1267 = vld [vmem:[#allocation10 + $0xa4] sm:$0xf]
    %v1268 = vld [vmem:[#allocation10 + $0xa8] sm:$0xf]
    %v1269 = vld [vmem:[#allocation10 + $0xac] sm:$0xf]
    %v1270 = vld [vmem:[#allocation10 + $0xb0] sm:$0xf]
    %v1271 = vld [vmem:[#allocation10 + $0xb4] sm:$0xf]
    %v1272 = vld [vmem:[#allocation10 + $0xb8] sm:$0xf]
    %v1273 = vld [vmem:[#allocation10 + $0xbc] sm:$0xf]
    %v1274 = vld [vmem:[#allocation10 + $0xc0] sm:$0xf]
    %v1275 = vld [vmem:[#allocation10 + $0xc4] sm:$0xf]
    %v1276 = vld [vmem:[#allocation10 + $0xc8] sm:$0xf]
    %v1277 = vld [vmem:[#allocation10 + $0xcc] sm:$0xf]
    %v1278 = vld [vmem:[#allocation10 + $0xd0] sm:$0xf]
    %v1279 = vld [vmem:[#allocation10 + $0xd4] sm:$0xf]
    %v1280 = vld [vmem:[#allocation10 + $0xd8] sm:$0xf]
    %v1281 = vld [vmem:[#allocation10 + $0xdc] sm:$0xf]
    %v1282 = vld [vmem:[#allocation10 + $0xe0] sm:$0xf]
    %v1283 = vld [vmem:[#allocation10 + $0xe4] sm:$0xf]
    %v1284 = vld [vmem:[#allocation10 + $0xe8] sm:$0xf]
    %v1285 = vld [vmem:[#allocation10 + $0xec] sm:$0xf]
    %v1286 = vld [vmem:[#allocation10 + $0xf0] sm:$0xf]
    %v1287 = vld [vmem:[#allocation10 + $0xf4] sm:$0xf]
    %v1288 = vld [vmem:[#allocation10 + $0xf8] sm:$0xf]
    %v1289 = vld [vmem:[#allocation10 + $0xfc] sm:$0xf]
    %v1290 = vld [vmem:[%s3] sm:$0x1]
    %v1292 = vperm.slane %v1290, 0
    %v1358 = vunpack.c.l.b16 %v1226
    %v1359 = vunpack.c.l.b16 %v1227
    %v1360 = vunpack.c.l.b16 %v1228
    %v1361 = vunpack.c.l.b16 %v1229
    %v1362 = vunpack.c.l.b16 %v1230
    %v1363 = vunpack.c.l.b16 %v1231
    %v1364 = vunpack.c.l.b16 %v1232
    %v1365 = vunpack.c.l.b16 %v1233
    %v1366 = vunpack.c.l.b16 %v1234
    %v1367 = vunpack.c.l.b16 %v1235
    %v1368 = vunpack.c.l.b16 %v1236
    %v1369 = vunpack.c.l.b16 %v1237
    %v1370 = vunpack.c.l.b16 %v1238
    %v1371 = vunpack.c.l.b16 %v1239
    %v1372 = vunpack.c.l.b16 %v1240
    %v1373 = vunpack.c.l.b16 %v1241
    %v1374 = vunpack.c.l.b16 %v1242
    %v1375 = vunpack.c.l.b16 %v1243
    %v1376 = vunpack.c.l.b16 %v1244
    %v1377 = vunpack.c.l.b16 %v1245
    %v1378 = vunpack.c.l.b16 %v1246
    %v1379 = vunpack.c.l.b16 %v1247
    %v1380 = vunpack.c.l.b16 %v1248
    %v1381 = vunpack.c.l.b16 %v1249
    %v1382 = vunpack.c.l.b16 %v1250
    %v1383 = vunpack.c.l.b16 %v1251
    %v1384 = vunpack.c.l.b16 %v1252
    %v1385 = vunpack.c.l.b16 %v1253
    %v1386 = vunpack.c.l.b16 %v1254
    %v1387 = vunpack.c.l.b16 %v1255
    %v1388 = vunpack.c.l.b16 %v1256
    %v1389 = vunpack.c.l.b16 %v1257
    %v1390 = vunpack.c.l.b16 %v1258
    %v1391 = vunpack.c.l.b16 %v1259
    %v1392 = vunpack.c.l.b16 %v1260
    %v1393 = vunpack.c.l.b16 %v1261
    %v1394 = vunpack.c.l.b16 %v1262
    %v1395 = vunpack.c.l.b16 %v1263
    %v1396 = vunpack.c.l.b16 %v1264
    %v1397 = vunpack.c.l.b16 %v1265
    %v1398 = vunpack.c.l.b16 %v1266
    %v1399 = vunpack.c.l.b16 %v1267
    %v1400 = vunpack.c.l.b16 %v1268
    %v1401 = vunpack.c.l.b16 %v1269
    %v1402 = vunpack.c.l.b16 %v1270
    %v1403 = vunpack.c.l.b16 %v1271
    %v1404 = vunpack.c.l.b16 %v1272
    %v1405 = vunpack.c.l.b16 %v1273
    %v1406 = vunpack.c.l.b16 %v1274
    %v1407 = vunpack.c.l.b16 %v1275
    %v1408 = vunpack.c.l.b16 %v1276
    %v1409 = vunpack.c.l.b16 %v1277
    %v1410 = vunpack.c.l.b16 %v1278
    %v1411 = vunpack.c.l.b16 %v1279
    %v1412 = vunpack.c.l.b16 %v1280
    %v1413 = vunpack.c.l.b16 %v1281
    %v1414 = vunpack.c.l.b16 %v1282
    %v1415 = vunpack.c.l.b16 %v1283
    %v1416 = vunpack.c.l.b16 %v1284
    %v1417 = vunpack.c.l.b16 %v1285
    %v1418 = vunpack.c.l.b16 %v1286
    %v1419 = vunpack.c.l.b16 %v1287
    %v1420 = vunpack.c.l.b16 %v1288
    %v1421 = vunpack.c.l.b16 %v1289
    %v1422 = vpack.c.b16 %v1359, %v1358
    %v1423 = vpack.c.b16 %v1361, %v1360
    %v1424 = vpack.c.b16 %v1363, %v1362
    %v1425 = vpack.c.b16 %v1365, %v1364
    %v1426 = vpack.c.b16 %v1367, %v1366
    %v1427 = vpack.c.b16 %v1369, %v1368
    %v1428 = vpack.c.b16 %v1371, %v1370
    %v1429 = vpack.c.b16 %v1373, %v1372
    %v1430 = vpack.c.b16 %v1375, %v1374
    %v1431 = vpack.c.b16 %v1377, %v1376
    %v1432 = vpack.c.b16 %v1379, %v1378
    %v1433 = vpack.c.b16 %v1381, %v1380
    %v1434 = vpack.c.b16 %v1383, %v1382
    %v1435 = vpack.c.b16 %v1385, %v1384
    %v1436 = vpack.c.b16 %v1387, %v1386
    %v1437 = vpack.c.b16 %v1389, %v1388
    %v1438 = vpack.c.b16 %v1391, %v1390
    %v1439 = vpack.c.b16 %v1393, %v1392
    %v1440 = vpack.c.b16 %v1395, %v1394
    %v1441 = vpack.c.b16 %v1397, %v1396
    %v1442 = vpack.c.b16 %v1399, %v1398
    %v1443 = vpack.c.b16 %v1401, %v1400
    %v1444 = vpack.c.b16 %v1403, %v1402
    %v1445 = vpack.c.b16 %v1405, %v1404
    %v1446 = vpack.c.b16 %v1407, %v1406
    %v1447 = vpack.c.b16 %v1409, %v1408
    %v1448 = vpack.c.b16 %v1411, %v1410
    %v1449 = vpack.c.b16 %v1413, %v1412
    %v1450 = vpack.c.b16 %v1415, %v1414
    %v1451 = vpack.c.b16 %v1417, %v1416
    %v1452 = vpack.c.b16 %v1419, %v1418
    %v1453 = vpack.c.b16 %v1421, %v1420
    %1486 = vmatpush.bf16.msra.mxu0 %v1429
    %1487 = vmatpush.bf16.msra.mxu0 %v1428
    %1488 = vmatpush.bf16.msra.mxu0 %v1427
    %1489 = vmatpush.bf16.msra.mxu0 %v1426
    %1490 = vmatpush.bf16.msra.mxu0 %v1425
    %1491 = vmatpush.bf16.msra.mxu0 %v1424
    %1492 = vmatpush.bf16.msra.mxu0 %v1423
    %1493 = vmatpush.bf16.msra.mxu0 %v1422
    %1494 = vmatmul.bf16.gmra.mxu0 %v1194
    %v1495 = vpop.f32.mrf.mxu0
    %v1496 = vadd.f32 %v1292, %v1495
    %v1497 = vpop.f32.mrf.mxu0
    %v1498 = vadd.f32 %v1292, %v1497
    %1499 = vmatmul.bf16.gmra.mxu0 %v1198
    %v1500 = vpop.f32.mrf.mxu0
    %v1501 = vadd.f32 %v1292, %v1500
    %v1502 = vpop.f32.mrf.mxu0
    %v1503 = vadd.f32 %v1292, %v1502
    %1504 = vmatmul.bf16.gmra.mxu0 %v1202
    %v1505 = vpop.f32.mrf.mxu0
    %v1506 = vadd.f32 %v1292, %v1505
    %v1507 = vpop.f32.mrf.mxu0
    %v1508 = vadd.f32 %v1292, %v1507
    %1509 = vmatmul.bf16.gmra.mxu0 %v1206
    %v1510 = vpop.f32.mrf.mxu0
    %v1511 = vadd.f32 %v1292, %v1510
    %v1512 = vpop.f32.mrf.mxu0
    %v1513 = vadd.f32 %v1292, %v1512
    %1514 = vmatmul.bf16.gmra.mxu0 %v1210
    %v1515 = vpop.f32.mrf.mxu0
    %v1516 = vadd.f32 %v1292, %v1515
    %v1517 = vpop.f32.mrf.mxu0
    %v1518 = vadd.f32 %v1292, %v1517
    %1519 = vmatmul.bf16.gmra.mxu0 %v1214
    %v1520 = vpop.f32.mrf.mxu0
    %v1521 = vadd.f32 %v1292, %v1520
    %v1522 = vpop.f32.mrf.mxu0
    %v1523 = vadd.f32 %v1292, %v1522
    %1524 = vmatmul.bf16.gmra.mxu0 %v1218
    %v1525 = vpop.f32.mrf.mxu0
    %v1526 = vadd.f32 %v1292, %v1525
    %v1527 = vpop.f32.mrf.mxu0
    %v1528 = vadd.f32 %v1292, %v1527
    %1529 = vmatmul.bf16.gmra.mxu0 %v1222
    %v1530 = vpop.f32.mrf.mxu0
    %v1531 = vadd.f32 %v1292, %v1530
    %v1532 = vpop.f32.mrf.mxu0
    %v1533 = vadd.f32 %v1292, %v1532
    %1534 = vdwg.mxu0
    %1535 = vmatpush.bf16.msra.mxu0 %v1437
    %1536 = vmatpush.bf16.msra.mxu0 %v1436
    %1537 = vmatpush.bf16.msra.mxu0 %v1435
    %1538 = vmatpush.bf16.msra.mxu0 %v1434
    %1539 = vmatpush.bf16.msra.mxu0 %v1433
    %1540 = vmatpush.bf16.msra.mxu0 %v1432
    %1541 = vmatpush.bf16.msra.mxu0 %v1431
    %1542 = vmatpush.bf16.msra.mxu0 %v1430
    %1543 = vmatmul.bf16.gmra.mxu0 %v1195
    %v1544 = vpop.f32.mrf.mxu0
    %v1545 = vadd.f32 %v1496, %v1544
    %v1546 = vpop.f32.mrf.mxu0
    %v1547 = vadd.f32 %v1498, %v1546
    %1548 = vmatmul.bf16.gmra.mxu0 %v1199
    %v1549 = vpop.f32.mrf.mxu0
    %v1550 = vadd.f32 %v1501, %v1549
    %v1551 = vpop.f32.mrf.mxu0
    %v1552 = vadd.f32 %v1503, %v1551
    %1553 = vmatmul.bf16.gmra.mxu0 %v1203
    %v1554 = vpop.f32.mrf.mxu0
    %v1555 = vadd.f32 %v1506, %v1554
    %v1556 = vpop.f32.mrf.mxu0
    %v1557 = vadd.f32 %v1508, %v1556
    %1558 = vmatmul.bf16.gmra.mxu0 %v1207
    %v1559 = vpop.f32.mrf.mxu0
    %v1560 = vadd.f32 %v1511, %v1559
    %v1561 = vpop.f32.mrf.mxu0
    %v1562 = vadd.f32 %v1513, %v1561
    %1563 = vmatmul.bf16.gmra.mxu0 %v1211
    %v1564 = vpop.f32.mrf.mxu0
    %v1565 = vadd.f32 %v1516, %v1564
    %v1566 = vpop.f32.mrf.mxu0
    %v1567 = vadd.f32 %v1518, %v1566
    %1568 = vmatmul.bf16.gmra.mxu0 %v1215
    %v1569 = vpop.f32.mrf.mxu0
    %v1570 = vadd.f32 %v1521, %v1569
    %v1571 = vpop.f32.mrf.mxu0
    %v1572 = vadd.f32 %v1523, %v1571
    %1573 = vmatmul.bf16.gmra.mxu0 %v1219
    %v1574 = vpop.f32.mrf.mxu0
    %v1575 = vadd.f32 %v1526, %v1574
    %v1576 = vpop.f32.mrf.mxu0
    %v1577 = vadd.f32 %v1528, %v1576
    %1578 = vmatmul.bf16.gmra.mxu0 %v1223
    %v1579 = vpop.f32.mrf.mxu0
    %v1580 = vadd.f32 %v1531, %v1579
    %v1581 = vpop.f32.mrf.mxu0
    %v1582 = vadd.f32 %v1533, %v1581
    %1583 = vdwg.mxu0
    %1584 = vmatpush.bf16.msra.mxu0 %v1445
    %1585 = vmatpush.bf16.msra.mxu0 %v1444
    %1586 = vmatpush.bf16.msra.mxu0 %v1443
    %1587 = vmatpush.bf16.msra.mxu0 %v1442
    %1588 = vmatpush.bf16.msra.mxu0 %v1441
    %1589 = vmatpush.bf16.msra.mxu0 %v1440
    %1590 = vmatpush.bf16.msra.mxu0 %v1439
    %1591 = vmatpush.bf16.msra.mxu0 %v1438
    %1592 = vmatmul.bf16.gmra.mxu0 %v1196
    %v1593 = vpop.f32.mrf.mxu0
    %v1594 = vadd.f32 %v1545, %v1593
    %v1595 = vpop.f32.mrf.mxu0
    %v1596 = vadd.f32 %v1547, %v1595
    %1597 = vmatmul.bf16.gmra.mxu0 %v1200
    %v1598 = vpop.f32.mrf.mxu0
    %v1599 = vadd.f32 %v1550, %v1598
    %v1600 = vpop.f32.mrf.mxu0
    %v1601 = vadd.f32 %v1552, %v1600
    %1602 = vmatmul.bf16.gmra.mxu0 %v1204
    %v1603 = vpop.f32.mrf.mxu0
    %v1604 = vadd.f32 %v1555, %v1603
    %v1605 = vpop.f32.mrf.mxu0
    %v1606 = vadd.f32 %v1557, %v1605
    %1607 = vmatmul.bf16.gmra.mxu0 %v1208
    %v1608 = vpop.f32.mrf.mxu0
    %v1609 = vadd.f32 %v1560, %v1608
    %v1610 = vpop.f32.mrf.mxu0
    %v1611 = vadd.f32 %v1562, %v1610
    %1612 = vmatmul.bf16.gmra.mxu0 %v1212
    %v1613 = vpop.f32.mrf.mxu0
    %v1614 = vadd.f32 %v1565, %v1613
    %v1615 = vpop.f32.mrf.mxu0
    %v1616 = vadd.f32 %v1567, %v1615
    %1617 = vmatmul.bf16.gmra.mxu0 %v1216
    %v1618 = vpop.f32.mrf.mxu0
    %v1619 = vadd.f32 %v1570, %v1618
    %v1620 = vpop.f32.mrf.mxu0
    %v1621 = vadd.f32 %v1572, %v1620
    %1622 = vmatmul.bf16.gmra.mxu0 %v1220
    %v1623 = vpop.f32.mrf.mxu0
    %v1624 = vadd.f32 %v1575, %v1623
    %v1625 = vpop.f32.mrf.mxu0
    %v1626 = vadd.f32 %v1577, %v1625
    %1627 = vmatmul.bf16.gmra.mxu0 %v1224
    %v1628 = vpop.f32.mrf.mxu0
    %v1629 = vadd.f32 %v1580, %v1628
    %v1630 = vpop.f32.mrf.mxu0
    %v1631 = vadd.f32 %v1582, %v1630
    %1632 = vdwg.mxu0
    %1633 = vmatpush.bf16.msra.mxu0 %v1453
    %1634 = vmatpush.bf16.msra.mxu0 %v1452
    %1635 = vmatpush.bf16.msra.mxu0 %v1451
    %1636 = vmatpush.bf16.msra.mxu0 %v1450
    %1637 = vmatpush.bf16.msra.mxu0 %v1449
    %1638 = vmatpush.bf16.msra.mxu0 %v1448
    %1639 = vmatpush.bf16.msra.mxu0 %v1447
    %1640 = vmatpush.bf16.msra.mxu0 %v1446
    %1641 = vmatmul.bf16.gmra.mxu0 %v1197
    %v1642 = vpop.f32.mrf.mxu0
    %v1643 = vadd.f32 %v1594, %v1642
    %v1644 = vpop.f32.mrf.mxu0
    %v1645 = vadd.f32 %v1596, %v1644
    %1646 = vmatmul.bf16.gmra.mxu0 %v1201
    %v1647 = vpop.f32.mrf.mxu0
    %v1648 = vadd.f32 %v1599, %v1647
    %v1649 = vpop.f32.mrf.mxu0
    %v1650 = vadd.f32 %v1601, %v1649
    %1651 = vmatmul.bf16.gmra.mxu0 %v1205
    %v1652 = vpop.f32.mrf.mxu0
    %v1653 = vadd.f32 %v1604, %v1652
    %v1654 = vpop.f32.mrf.mxu0
    %v1655 = vadd.f32 %v1606, %v1654
    %1656 = vmatmul.bf16.gmra.mxu0 %v1209
    %v1657 = vpop.f32.mrf.mxu0
    %v1658 = vadd.f32 %v1609, %v1657
    %v1659 = vpop.f32.mrf.mxu0
    %v1660 = vadd.f32 %v1611, %v1659
    %1661 = vmatmul.bf16.gmra.mxu0 %v1213
    %v1662 = vpop.f32.mrf.mxu0
    %v1663 = vadd.f32 %v1614, %v1662
    %v1664 = vpop.f32.mrf.mxu0
    %v1665 = vadd.f32 %v1616, %v1664
    %1666 = vmatmul.bf16.gmra.mxu0 %v1217
    %v1667 = vpop.f32.mrf.mxu0
    %v1668 = vadd.f32 %v1619, %v1667
    %v1669 = vpop.f32.mrf.mxu0
    %v1670 = vadd.f32 %v1621, %v1669
    %1671 = vmatmul.bf16.gmra.mxu0 %v1221
    %v1672 = vpop.f32.mrf.mxu0
    %v1673 = vadd.f32 %v1624, %v1672
    %v1674 = vpop.f32.mrf.mxu0
    %v1675 = vadd.f32 %v1626, %v1674
    %1676 = vmatmul.bf16.gmra.mxu0 %v1225
    %v1677 = vpop.f32.mrf.mxu0
    %v1678 = vadd.f32 %v1629, %v1677
    %v1679 = vpop.f32.mrf.mxu0
    %v1680 = vadd.f32 %v1631, %v1679
    %1681 = vdwg.mxu0
    %v1682 = vmax.f32 %v1643, 0.0
    %v1683 = vmax.f32 %v1645, 0.0
    %v1684 = vmax.f32 %v1648, 0.0
    %v1685 = vmax.f32 %v1650, 0.0
    %v1686 = vmax.f32 %v1653, 0.0
    %v1687 = vmax.f32 %v1655, 0.0
    %v1688 = vmax.f32 %v1658, 0.0
    %v1689 = vmax.f32 %v1660, 0.0
    %v1690 = vmax.f32 %v1663, 0.0
    %v1691 = vmax.f32 %v1665, 0.0
    %v1692 = vmax.f32 %v1668, 0.0
    %v1693 = vmax.f32 %v1670, 0.0
    %v1694 = vmax.f32 %v1673, 0.0
    %v1695 = vmax.f32 %v1675, 0.0
    %v1696 = vmax.f32 %v1678, 0.0
    %v1697 = vmax.f32 %v1680, 0.0
    %v1698 = vld [vmem:[%s4] sm:$0xf]
    %v1699 = vpack.c.bf16 %v1683, %v1682
    %v1700 = vpack.c.bf16 %v1685, %v1684
    %v1701 = vpack.c.bf16 %v1687, %v1686
    %v1702 = vpack.c.bf16 %v1689, %v1688
    %v1703 = vpack.c.bf16 %v1691, %v1690
    %v1704 = vpack.c.bf16 %v1693, %v1692
    %v1705 = vpack.c.bf16 %v1695, %v1694
    %v1706 = vpack.c.bf16 %v1697, %v1696
    %1707 = vmatpush.bf16.xpose.msra.mxu0 %v1706
    %1708 = vmatpush.bf16.xpose.msra.mxu0 %v1705
    %1709 = vmatpush.bf16.xpose.msra.mxu0 %v1704
    %1710 = vmatpush.bf16.xpose.msra.mxu0 %v1703
    %1711 = vmatpush.bf16.xpose.msra.mxu0 %v1702
    %1712 = vmatpush.bf16.xpose.msra.mxu0 %v1701
    %1713 = vmatpush.bf16.xpose.msra.mxu0 %v1700
    %1714 = vmatpush.bf16.xpose.msra.mxu0 %v1699
    %1715 = vmatmul.bf16.gmra.mxu0 %v1698
    %v1716 = vpop.f32.mrf.mxu0
    %v1717 = vadd.f32 0.0, %v1716
    %v1718 = vpop.f32.mrf.mxu0
    %1719 = vdwg.mxu0
    %v1720 = vld [vmem:[#allocation7] sm:$0x1]
    %1722 = vset.pattern.permute.xlu0 0
    %1723 = vperm.xlu0 %1722, %v1720
    %v1724 = vpop.permute.xlu0 %1723
    %v1726 = vperm.slane %v1724, 0
    %v1727 = vadd.f32 %v1717, %v1726
    %v1728 = vxor.u32 %v1727, 2147483648
    %v1729 = vmul.f32 %v1728, 1.442695
    %v1730 = vpow.pop %v1729
    %v1731 = vadd.f32 %v1730, 1.0
    %v1732 = vrcp.pop %v1731
    %v1733 = vmul.f32 %v1731, %v1732
    %v1734 = vsub.f32 1.0, %v1733
    %v1735 = vmul.f32 %v1732, %v1734
    %v1736 = vadd.f32 %v1732, %v1735
    %vm1737 = vweird.f32 %v1731
    %vm1738 = vweird.f32 %v1732
    %vm1739 = vmor %vm1737, %vm1738
    %v1740 = vsel %vm1739, %v1732, %v1736
    %v1741 = vand.u32 2147483647, %v1731
    %vm1742 = vcmp.eq.f32.partialorder %v1741, 8.507059e+37
    %v1743 = vand.u32 %v1731, 2147483648
    %v1744 = vor.u32 1.1754944e-38, %v1743
    %v1745 = vsel %vm1742, %v1744, %v1740
    %v1746 = vmul.f32 1.0, %v1745
    %1747 = vst [vmem:[%s8] sm:$0x1] %v1746
    // Predicated region
    $region38: #{simple_nn_forward.2} parent=1 // pred_check
      _
    $region39: #{simple_nn_forward.2} parent=1 // pred_check_branch
      %1749 = sbr.rel (0) target = $region41
    $region40: #{simple_nn_forward.2} parent=1 // pred_region
      _
    $region41: #{simple_nn_forward.2} parent=1 // pred_fallthru
      _
    // Predicated region
    $region42: #{simple_nn_forward.2} parent=1 // pred_check
      _
    $region43: #{simple_nn_forward.2} parent=1 // pred_check_branch
      %1751 = sbr.rel (0) target = $region45
    $region44: #{simple_nn_forward.2} parent=1 // pred_region
      _
    $region45: #{simple_nn_forward.2} parent=1 // pred_fallthru
      _
    %1752 = vsyncpa [#allocation9], 1
    %1753 = vsyncpa [#allocation11], 1

</llo_original>
